<compile_context>
chip_gen: v7x
topology: tpu7x:2x2x1
jax: 0.10.0
libtpu: 0.0.40
codegen_flags: <defaults>
</compile_context>

<pallas_src>
import math
import functools

import jax
import jax.numpy as jnp
from jax import lax
from jax.experimental import pallas as pl
from jax.experimental.pallas import tpu as pltpu


# ----------------------------------------------------------------------------
# Kernel
# ----------------------------------------------------------------------------
def _mhsa_kernel(*refs, head_num, sub_dim, scale, tq, training):
    if training:
        (x_ref, wqkv_ref, wo_ref, bqkv_ref, bo_ref, mask_ref, o_ref, ctx_ref) = refs
    else:
        (x_ref, wqkv_ref, wo_ref, bqkv_ref, bo_ref, o_ref, ctx_ref) = refs
        mask_ref = None

    x = x_ref[0]                                    # (N, D)
    N, D = x.shape
    cdt = x.dtype                                   # MXU operand dtype

    # Fused QKV projection: one (N, D) x (D, 3D) MXU matmul, f32 accumulation.
    qkv = jnp.dot(x, wqkv_ref[...], preferred_element_type=jnp.float32) + bqkv_ref[...]
    # Fold 1/sqrt(sub) into q once (N*D mul instead of N*N per head/tile).
    q = (qkv[:, :D] * jnp.float32(scale)).astype(cdt)
    k = qkv[:, D:2 * D].astype(cdt)
    v = qkv[:, 2 * D:].astype(cdt)

    n_q_tiles = N // tq
    for t in range(n_q_tiles):                      # static unroll over query tiles
        r0 = t * tq
        qt = q[r0:r0 + tq, :]                       # (tq, D)

        for h in range(head_num):                   # static unroll over heads
            lo = h * sub_dim
            qh = qt[:, lo:lo + sub_dim]             # (tq, sub)
            kh = k[:, lo:lo + sub_dim]              # (N, sub)
            vh = v[:, lo:lo + sub_dim]              # (N, sub)

            # scores = q_h k_h^T (scale already folded into q); contract feature dims.
            s = lax.dot_general(qh, kh, (((1,), (1,)), ((), ())),
                                preferred_element_type=jnp.float32)      # (tq, N)

            # Numerically-stable softmax with deferred normalisation.
            s = s - jnp.max(s, axis=-1, keepdims=True)
            e = jnp.exp(s)
            row_sum = jnp.sum(e, axis=-1, keepdims=True)                 # (tq, 1)

            if training:
                # mask holds {0, 1/(1-p)}; dropout(softmax(s)) @ v
                # == ((mask * e) @ v) / row_sum because row_sum is a per-row scalar.
                e = e * mask_ref[0, h, r0:r0 + tq, :]

            ctx_h = jnp.dot(e.astype(cdt), vh,
                            preferred_element_type=jnp.float32)          # (tq, sub)
            ctx_ref[:, lo:lo + sub_dim] = ctx_h * (1.0 / row_sum)

        # Output projection for this q tile (== concat heads then nn.Linear).
        out = jnp.dot(ctx_ref[...].astype(wo_ref.dtype), wo_ref[...],
                      preferred_element_type=jnp.float32) + bo_ref[...]
        o_ref[0, r0:r0 + tq, :] = out.astype(o_ref.dtype)


# ----------------------------------------------------------------------------
# Wrapper
# ----------------------------------------------------------------------------
def _pick_q_tile(n):
    for t in (512, 256, 128, 64):
        if n % t == 0:
            return t
    return n


def multihead_self_attention(x, params, *, head_num, p_drop=0.1,
                             training=False, seed=0):
    """x: (B, N, D). params: wq/wk/wv/wo stored (D_in, D_out), bq/bk/bv/bo as (D,)."""
    B, N, D = x.shape
    assert D % head_num == 0
    sub_dim = D // head_num
    tq = _pick_q_tile(N)

    # Fuse QKV weights/biases once in the wrapper; weights in x.dtype (MXU operands),
    # biases in f32 (added to the f32 accumulator).
    w_qkv = jnp.concatenate([params["wq"], params["wk"], params["wv"]],
                            axis=1).astype(x.dtype)                       # (D, 3D)
    b_qkv = jnp.concatenate([params["bq"], params["bk"], params["bv"]]
                            ).reshape(1, 3 * D).astype(jnp.float32)
    w_o = params["wo"].astype(x.dtype)
    b_o = params["bo"].reshape(1, D).astype(jnp.float32)

    x_spec = pl.BlockSpec((1, N, D), lambda b: (b, 0, 0))
    out_spec = pl.BlockSpec((1, N, D), lambda b: (b, 0, 0))
    wqkv_spec = pl.BlockSpec((D, 3 * D), lambda b: (0, 0))   # resident across grid steps
    wo_spec = pl.BlockSpec((D, D), lambda b: (0, 0))
    bqkv_spec = pl.BlockSpec((1, 3 * D), lambda b: (0, 0))
    bo_spec = pl.BlockSpec((1, D), lambda b: (0, 0))

    in_specs = [x_spec, wqkv_spec, wo_spec, bqkv_spec, bo_spec]
    args = [x, w_qkv, w_o, b_qkv, b_o]

    if training:
        assert 0.0 <= p_drop < 1.0, "p_drop must be in [0, 1)"
        # Host-generated keep-mask pre-scaled by 1/(1-p). Not bit-identical to torch RNG.
        keep = jax.random.bernoulli(jax.random.PRNGKey(seed), 1.0 - p_drop,
                                    (B, head_num, N, N))
        mask = keep.astype(jnp.float32) * (1.0 / (1.0 - p_drop))
        in_specs.append(pl.BlockSpec((1, head_num, N, N), lambda b: (b, 0, 0, 0)))
        args.append(mask)

    # Working-set estimate -> VMEM limit (cap at 48 MiB so it also fits v7x's 64 MiB).
    eb = jnp.dtype(x.dtype).itemsize
    est = ((D * 3 * D + D * D) * eb * 2            # weights (double-buffered by default)
           + 2 * N * D * eb * 2 * 2                # x in + out blocks, double-buffered
           + N * 3 * D * 4                         # qkv in f32
           + 2 * tq * N * 4 + tq * D * 4           # scores / exp + ctx scratch
           + (head_num * N * N * 4 * 2 if training else 0))
    vmem_limit = int(min(max(2 * est, 32 * 1024 * 1024), 48 * 1024 * 1024))

    kernel = functools.partial(
        _mhsa_kernel, head_num=head_num, sub_dim=sub_dim,
        scale=1.0 / math.sqrt(sub_dim), tq=tq, training=training)

    return pl.pallas_call(
        kernel,
        grid_spec=pltpu.PrefetchScalarGridSpec(
            num_scalar_prefetch=0,
            grid=(B,),
            in_specs=in_specs,
            out_specs=out_spec,
            scratch_shapes=[pltpu.VMEM((tq, D), jnp.float32)],
        ),
        out_shape=jax.ShapeDtypeStruct((B, N, D), x.dtype),
        compiler_params=pltpu.CompilerParams(
            dimension_semantics=("parallel",),
            vmem_limit_bytes=vmem_limit,
        ),
    )(*args)


# ----------------------------------------------------------------------------
# Deterministic parameter construction (mirrors nn.Linear / xavier init style)
# ----------------------------------------------------------------------------
def init_params(key, d_model, dtype=jnp.float32):
    ks = jax.random.split(key, 8)
    w_limit = math.sqrt(6.0 / (d_model + d_model))     # xavier_uniform for square weights
    b_bound = 1.0 / math.sqrt(d_model)                 # nn.Linear default bias init

    def w(k):
        return jax.random.uniform(k, (d_model, d_model), dtype, -w_limit, w_limit)

    def b(k):
        return jax.random.uniform(k, (d_model,), dtype, -b_bound, b_bound)

    return {"wq": w(ks[0]), "wk": w(ks[1]), "wv": w(ks[2]), "wo": w(ks[3]),
            "bq": b(ks[4]), "bk": b(ks[5]), "bv": b(ks[6]), "bo": b(ks[7])}


# ----------------------------------------------------------------------------
# Pure-JAX reference (high precision) for the eval-mode check
# ----------------------------------------------------------------------------
def reference_mhsa(x, params, head_num):
    B, N, D = x.shape
    sub = D // head_num
    hp = jax.lax.Precision.HIGHEST
    q = jnp.matmul(x, params["wq"], precision=hp) + params["bq"]
    k = jnp.matmul(x, params["wk"], precision=hp) + params["bk"]
    v = jnp.matmul(x, params["wv"], precision=hp) + params["bv"]
    q = q.reshape(B, N, head_num, sub).transpose(0, 2, 1, 3)
    k = k.reshape(B, N, head_num, sub).transpose(0, 2, 1, 3)
    v = v.reshape(B, N, head_num, sub).transpose(0, 2, 1, 3)
    s = jnp.einsum("bhqd,bhkd->bhqk", q, k, precision=hp) * (1.0 / math.sqrt(sub))
    p = jax.nn.softmax(s, axis=-1)
    ctx = jnp.einsum("bhqk,bhkd->bhqd", p, v, precision=hp)
    ctx = ctx.transpose(0, 2, 1, 3).reshape(B, N, D)
    return jnp.matmul(ctx, params["wo"], precision=hp) + params["bo"]


# ----------------------------------------------------------------------------
# Demo / self-check
# ----------------------------------------------------------------------------
if __name__ == "__main__":
    B, N, D, H = 2, 16, 32, 4          # batch=2, points=16, input_dim=32, head_num=4

    key = jax.random.PRNGKey(0)
    kx, kp = jax.random.split(key)
    x = jax.random.normal(kx, (B, N, D), dtype=jnp.float32)
    params = init_params(kp, D)

    # Eval-mode forward (dropout == identity): reference check.
    # Tolerance accounts for MXU default-precision matmuls vs. HIGHEST-precision reference.
    y = multihead_self_attention(x, params, head_num=H, training=False)
    y = jax.block_until_ready(y)
    ref = reference_mhsa(x, params, H)
    assert y.shape == (B, N, D)
    max_err = float(jnp.max(jnp.abs(y - ref)))
    assert jnp.allclose(y, ref, atol=2e-2, rtol=2e-2), f"eval-mode mismatch, max |err| = {max_err}"

    # Training-mode forward (dropout on attention weights): structural check only.
    y_tr = multihead_self_attention(x, params, head_num=H, training=True, seed=0)
    y_tr = jax.block_until_ready(y_tr)
    assert y_tr.shape == (B, N, D)
    assert bool(jnp.all(jnp.isfinite(y_tr)))

    print("KERNEL_OK")
</pallas_src>

<mosaic_0001>
module attributes {stable_mosaic.version = 11 : i64} {
  func.func @_mhsa_kernel(%arg0: i32, %arg1: memref<1x16x32xf32, #tpu.memory_space<vmem>>, %arg2: memref<32x96xf32, #tpu.memory_space<vmem>>, %arg3: memref<32x32xf32, #tpu.memory_space<vmem>>, %arg4: memref<1x96xf32, #tpu.memory_space<vmem>>, %arg5: memref<1x32xf32, #tpu.memory_space<vmem>>, %arg6: memref<1x16x32xf32, #tpu.memory_space<vmem>>, %arg7: memref<16x32xf32, #tpu.memory_space<vmem>>) attributes {dimension_semantics = [#tpu.dimension_semantics<parallel>], iteration_bounds = array<i64: 2>, scalar_prefetch = 0 : i64, scratch_operands = 1 : i64, tpu.core_type = #tpu.core_type<tc>, window_params = [{transform_indices = @transform_0, window_bounds = array<i64: 1, 16, 32>}, {pipeline_mode = #tpu.pipeline_mode<synchronous>, transform_indices = @transform_1, window_bounds = array<i64: 32, 96>}, {pipeline_mode = #tpu.pipeline_mode<synchronous>, transform_indices = @transform_2, window_bounds = array<i64: 32, 32>}, {pipeline_mode = #tpu.pipeline_mode<synchronous>, transform_indices = @transform_3, window_bounds = array<i64: 1, 96>}, {pipeline_mode = #tpu.pipeline_mode<synchronous>, transform_indices = @transform_4, window_bounds = array<i64: 1, 32>}, {transform_indices = @transform_5, window_bounds = array<i64: 1, 16, 32>}]} {
    %c0 = arith.constant 0 : index
    %c0_0 = arith.constant 0 : index
    %c0_1 = arith.constant 0 : index
    %0 = vector.load %arg1[%c0, %c0_0, %c0_1] : memref<1x16x32xf32, #tpu.memory_space<vmem>>, vector<1x16x32xf32>
    %1 = vector.shape_cast %0 : vector<1x16x32xf32> to vector<16x32xf32>
    %c0_2 = arith.constant 0 : index
    %c0_3 = arith.constant 0 : index
    %2 = vector.load %arg2[%c0_2, %c0_3] : memref<32x96xf32, #tpu.memory_space<vmem>>, vector<32x96xf32>
    %cst = arith.constant dense<0.000000e+00> : vector<16x96xf32>
    %3 = tpu.matmul %1, %2, %cst {dimension_numbers = #tpu.dot_dimension_numbers<[1], [0], [0], [1], [0, 0, 1, 1], [], []>} : vector<16x32xf32>, vector<32x96xf32>, vector<16x96xf32> -> vector<16x96xf32>
    %c0_4 = arith.constant 0 : index
    %c0_5 = arith.constant 0 : index
    %4 = vector.load %arg4[%c0_4, %c0_5] : memref<1x96xf32, #tpu.memory_space<vmem>>, vector<1x96xf32>
    %5 = vector.broadcast %4 : vector<1x96xf32> to vector<16x96xf32>
    %6 = arith.addf %3, %5 : vector<16x96xf32>
    %7 = vector.extract_strided_slice %6 {offsets = [0, 0], sizes = [16, 32], strides = [1, 1]} : vector<16x96xf32> to vector<16x32xf32>
    %cst_6 = arith.constant 0.353553385 : f32
    %8 = vector.broadcast %cst_6 : f32 to vector<16x32xf32>
    %9 = arith.mulf %7, %8 : vector<16x32xf32>
    %10 = vector.extract_strided_slice %6 {offsets = [0, 32], sizes = [16, 32], strides = [1, 1]} : vector<16x96xf32> to vector<16x32xf32>
    %11 = vector.extract_strided_slice %6 {offsets = [0, 64], sizes = [16, 32], strides = [1, 1]} : vector<16x96xf32> to vector<16x32xf32>
    %12 = vector.extract_strided_slice %9 {offsets = [0, 0], sizes = [16, 8], strides = [1, 1]} : vector<16x32xf32> to vector<16x8xf32>
    %13 = vector.extract_strided_slice %10 {offsets = [0, 0], sizes = [16, 8], strides = [1, 1]} : vector<16x32xf32> to vector<16x8xf32>
    %14 = vector.extract_strided_slice %11 {offsets = [0, 0], sizes = [16, 8], strides = [1, 1]} : vector<16x32xf32> to vector<16x8xf32>
    %cst_7 = arith.constant dense<0.000000e+00> : vector<16x16xf32>
    %15 = tpu.matmul %12, %13, %cst_7 {dimension_numbers = #tpu.dot_dimension_numbers<[1], [1], [0], [0], [0, 0, 1, 0], [], []>} : vector<16x8xf32>, vector<16x8xf32>, vector<16x16xf32> -> vector<16x16xf32>
    %cst_8 = arith.constant dense<0xFF800000> : vector<16xf32>
    %16 = vector.multi_reduction <maximumf>, %15, %cst_8 [1] : vector<16x16xf32> to vector<16xf32>
    %17 = vector.shape_cast %16 : vector<16xf32> to vector<16x1xf32>
    %18 = vector.broadcast %17 : vector<16x1xf32> to vector<16x16xf32>
    %19 = arith.subf %15, %18 : vector<16x16xf32>
    %20 = math.exp %19 : vector<16x16xf32>
    %cst_9 = arith.constant dense<0.000000e+00> : vector<16xf32>
    %21 = vector.multi_reduction <add>, %20, %cst_9 [1] : vector<16x16xf32> to vector<16xf32>
    %22 = vector.shape_cast %21 : vector<16xf32> to vector<16x1xf32>
    %cst_10 = arith.constant dense<0.000000e+00> : vector<16x8xf32>
    %23 = tpu.matmul %20, %14, %cst_10 {dimension_numbers = #tpu.dot_dimension_numbers<[1], [0], [0], [1], [0, 0, 1, 1], [], []>} : vector<16x16xf32>, vector<16x8xf32>, vector<16x8xf32> -> vector<16x8xf32>
    %cst_11 = arith.constant 1.000000e+00 : f32
    %24 = vector.broadcast %cst_11 : f32 to vector<16x1xf32>
    %25 = arith.divf %24, %22 : vector<16x1xf32>
    %26 = vector.broadcast %25 : vector<16x1xf32> to vector<16x8xf32>
    %27 = arith.mulf %23, %26 : vector<16x8xf32>
    %c0_12 = arith.constant 0 : index
    %c0_13 = arith.constant 0 : index
    %28 = vector.load %arg7[%c0_12, %c0_13] : memref<16x32xf32, #tpu.memory_space<vmem>>, vector<16x8xf32>
    tpu.vector_store %arg7[%c0_12, %c0_13], %27 {strides = array<i32>} : memref<16x32xf32, #tpu.memory_space<vmem>>, vector<16x8xf32>,
    %29 = vector.extract_strided_slice %9 {offsets = [0, 8], sizes = [16, 8], strides = [1, 1]} : vector<16x32xf32> to vector<16x8xf32>
    %30 = vector.extract_strided_slice %10 {offsets = [0, 8], sizes = [16, 8], strides = [1, 1]} : vector<16x32xf32> to vector<16x8xf32>
    %31 = vector.extract_strided_slice %11 {offsets = [0, 8], sizes = [16, 8], strides = [1, 1]} : vector<16x32xf32> to vector<16x8xf32>
    %cst_14 = arith.constant dense<0.000000e+00> : vector<16x16xf32>
    %32 = tpu.matmul %29, %30, %cst_14 {dimension_numbers = #tpu.dot_dimension_numbers<[1], [1], [0], [0], [0, 0, 1, 0], [], []>} : vector<16x8xf32>, vector<16x8xf32>, vector<16x16xf32> -> vector<16x16xf32>
    %cst_15 = arith.constant dense<0xFF800000> : vector<16xf32>
    %33 = vector.multi_reduction <maximumf>, %32, %cst_15 [1] : vector<16x16xf32> to vector<16xf32>
    %34 = vector.shape_cast %33 : vector<16xf32> to vector<16x1xf32>
    %35 = vector.broadcast %34 : vector<16x1xf32> to vector<16x16xf32>
    %36 = arith.subf %32, %35 : vector<16x16xf32>
    %37 = math.exp %36 : vector<16x16xf32>
    %cst_16 = arith.constant dense<0.000000e+00> : vector<16xf32>
    %38 = vector.multi_reduction <add>, %37, %cst_16 [1] : vector<16x16xf32> to vector<16xf32>
    %39 = vector.shape_cast %38 : vector<16xf32> to vector<16x1xf32>
    %cst_17 = arith.constant dense<0.000000e+00> : vector<16x8xf32>
    %40 = tpu.matmul %37, %31, %cst_17 {dimension_numbers = #tpu.dot_dimension_numbers<[1], [0], [0], [1], [0, 0, 1, 1], [], []>} : vector<16x16xf32>, vector<16x8xf32>, vector<16x8xf32> -> vector<16x8xf32>
    %cst_18 = arith.constant 1.000000e+00 : f32
    %41 = vector.broadcast %cst_18 : f32 to vector<16x1xf32>
    %42 = arith.divf %41, %39 : vector<16x1xf32>
    %43 = vector.broadcast %42 : vector<16x1xf32> to vector<16x8xf32>
    %44 = arith.mulf %40, %43 : vector<16x8xf32>
    %c0_19 = arith.constant 0 : index
    %c8 = arith.constant 8 : index
    %45 = vector.load %arg7[%c0_19, %c8] : memref<16x32xf32, #tpu.memory_space<vmem>>, vector<16x8xf32>
    tpu.vector_store %arg7[%c0_19, %c8], %44 {strides = array<i32>} : memref<16x32xf32, #tpu.memory_space<vmem>>, vector<16x8xf32>,
    %46 = vector.extract_strided_slice %9 {offsets = [0, 16], sizes = [16, 8], strides = [1, 1]} : vector<16x32xf32> to vector<16x8xf32>
    %47 = vector.extract_strided_slice %10 {offsets = [0, 16], sizes = [16, 8], strides = [1, 1]} : vector<16x32xf32> to vector<16x8xf32>
    %48 = vector.extract_strided_slice %11 {offsets = [0, 16], sizes = [16, 8], strides = [1, 1]} : vector<16x32xf32> to vector<16x8xf32>
    %cst_20 = arith.constant dense<0.000000e+00> : vector<16x16xf32>
    %49 = tpu.matmul %46, %47, %cst_20 {dimension_numbers = #tpu.dot_dimension_numbers<[1], [1], [0], [0], [0, 0, 1, 0], [], []>} : vector<16x8xf32>, vector<16x8xf32>, vector<16x16xf32> -> vector<16x16xf32>
    %cst_21 = arith.constant dense<0xFF800000> : vector<16xf32>
    %50 = vector.multi_reduction <maximumf>, %49, %cst_21 [1] : vector<16x16xf32> to vector<16xf32>
    %51 = vector.shape_cast %50 : vector<16xf32> to vector<16x1xf32>
    %52 = vector.broadcast %51 : vector<16x1xf32> to vector<16x16xf32>
    %53 = arith.subf %49, %52 : vector<16x16xf32>
    %54 = math.exp %53 : vector<16x16xf32>
    %cst_22 = arith.constant dense<0.000000e+00> : vector<16xf32>
    %55 = vector.multi_reduction <add>, %54, %cst_22 [1] : vector<16x16xf32> to vector<16xf32>
    %56 = vector.shape_cast %55 : vector<16xf32> to vector<16x1xf32>
    %cst_23 = arith.constant dense<0.000000e+00> : vector<16x8xf32>
    %57 = tpu.matmul %54, %48, %cst_23 {dimension_numbers = #tpu.dot_dimension_numbers<[1], [0], [0], [1], [0, 0, 1, 1], [], []>} : vector<16x16xf32>, vector<16x8xf32>, vector<16x8xf32> -> vector<16x8xf32>
    %cst_24 = arith.constant 1.000000e+00 : f32
    %58 = vector.broadcast %cst_24 : f32 to vector<16x1xf32>
    %59 = arith.divf %58, %56 : vector<16x1xf32>
    %60 = vector.broadcast %59 : vector<16x1xf32> to vector<16x8xf32>
    %61 = arith.mulf %57, %60 : vector<16x8xf32>
    %c0_25 = arith.constant 0 : index
    %c16 = arith.constant 16 : index
    %62 = vector.load %arg7[%c0_25, %c16] : memref<16x32xf32, #tpu.memory_space<vmem>>, vector<16x8xf32>
    tpu.vector_store %arg7[%c0_25, %c16], %61 {strides = array<i32>} : memref<16x32xf32, #tpu.memory_space<vmem>>, vector<16x8xf32>,
    %63 = vector.extract_strided_slice %9 {offsets = [0, 24], sizes = [16, 8], strides = [1, 1]} : vector<16x32xf32> to vector<16x8xf32>
    %64 = vector.extract_strided_slice %10 {offsets = [0, 24], sizes = [16, 8], strides = [1, 1]} : vector<16x32xf32> to vector<16x8xf32>
    %65 = vector.extract_strided_slice %11 {offsets = [0, 24], sizes = [16, 8], strides = [1, 1]} : vector<16x32xf32> to vector<16x8xf32>
    %cst_26 = arith.constant dense<0.000000e+00> : vector<16x16xf32>
    %66 = tpu.matmul %63, %64, %cst_26 {dimension_numbers = #tpu.dot_dimension_numbers<[1], [1], [0], [0], [0, 0, 1, 0], [], []>} : vector<16x8xf32>, vector<16x8xf32>, vector<16x16xf32> -> vector<16x16xf32>
    %cst_27 = arith.constant dense<0xFF800000> : vector<16xf32>
    %67 = vector.multi_reduction <maximumf>, %66, %cst_27 [1] : vector<16x16xf32> to vector<16xf32>
    %68 = vector.shape_cast %67 : vector<16xf32> to vector<16x1xf32>
    %69 = vector.broadcast %68 : vector<16x1xf32> to vector<16x16xf32>
    %70 = arith.subf %66, %69 : vector<16x16xf32>
    %71 = math.exp %70 : vector<16x16xf32>
    %cst_28 = arith.constant dense<0.000000e+00> : vector<16xf32>
    %72 = vector.multi_reduction <add>, %71, %cst_28 [1] : vector<16x16xf32> to vector<16xf32>
    %73 = vector.shape_cast %72 : vector<16xf32> to vector<16x1xf32>
    %cst_29 = arith.constant dense<0.000000e+00> : vector<16x8xf32>
    %74 = tpu.matmul %71, %65, %cst_29 {dimension_numbers = #tpu.dot_dimension_numbers<[1], [0], [0], [1], [0, 0, 1, 1], [], []>} : vector<16x16xf32>, vector<16x8xf32>, vector<16x8xf32> -> vector<16x8xf32>
    %cst_30 = arith.constant 1.000000e+00 : f32
    %75 = vector.broadcast %cst_30 : f32 to vector<16x1xf32>
    %76 = arith.divf %75, %73 : vector<16x1xf32>
    %77 = vector.broadcast %76 : vector<16x1xf32> to vector<16x8xf32>
    %78 = arith.mulf %74, %77 : vector<16x8xf32>
    %c0_31 = arith.constant 0 : index
    %c24 = arith.constant 24 : index
    %79 = vector.load %arg7[%c0_31, %c24] : memref<16x32xf32, #tpu.memory_space<vmem>>, vector<16x8xf32>
    tpu.vector_store %arg7[%c0_31, %c24], %78 {strides = array<i32>} : memref<16x32xf32, #tpu.memory_space<vmem>>, vector<16x8xf32>,
    %c0_32 = arith.constant 0 : index
    %c0_33 = arith.constant 0 : index
    %80 = vector.load %arg7[%c0_32, %c0_33] : memref<16x32xf32, #tpu.memory_space<vmem>>, vector<16x32xf32>
    %c0_34 = arith.constant 0 : index
    %c0_35 = arith.constant 0 : index
    %81 = vector.load %arg3[%c0_34, %c0_35] : memref<32x32xf32, #tpu.memory_space<vmem>>, vector<32x32xf32>
    %cst_36 = arith.constant dense<0.000000e+00> : vector<16x32xf32>
    %82 = tpu.matmul %80, %81, %cst_36 {dimension_numbers = #tpu.dot_dimension_numbers<[1], [0], [0], [1], [0, 0, 1, 1], [], []>} : vector<16x32xf32>, vector<32x32xf32>, vector<16x32xf32> -> vector<16x32xf32>
    %c0_37 = arith.constant 0 : index
    %c0_38 = arith.constant 0 : index
    %83 = vector.load %arg5[%c0_37, %c0_38] : memref<1x32xf32, #tpu.memory_space<vmem>>, vector<1x32xf32>
    %84 = vector.broadcast %83 : vector<1x32xf32> to vector<16x32xf32>
    %85 = arith.addf %82, %84 : vector<16x32xf32>
    %c0_39 = arith.constant 0 : index
    %c0_40 = arith.constant 0 : index
    %c0_41 = arith.constant 0 : index
    %86 = vector.load %arg6[%c0_39, %c0_40, %c0_41] : memref<1x16x32xf32, #tpu.memory_space<vmem>>, vector<1x16x32xf32>
    %87 = vector.shape_cast %86 : vector<1x16x32xf32> to vector<16x32xf32>
    %88 = vector.shape_cast %85 : vector<16x32xf32> to vector<1x16x32xf32>
    tpu.vector_store %arg6[%c0_39, %c0_40, %c0_41], %88 {strides = array<i32>} : memref<1x16x32xf32, #tpu.memory_space<vmem>>, vector<1x16x32xf32>,
    return
  }
  func.func @transform_0(%arg0: i32) -> (i32, i32, i32) {
    %c0_i32 = arith.constant 0 : i32
    %c0_i32_0 = arith.constant 0 : i32
    %c0_i32_1 = arith.constant 0 : i32
    return %arg0, %c0_i32, %c0_i32_0 : i32, i32, i32
  }
  func.func @transform_1(%arg0: i32) -> (i32, i32) {
    %c0_i32 = arith.constant 0 : i32
    %c0_i32_0 = arith.constant 0 : i32
    %c0_i32_1 = arith.constant 0 : i32
    return %c0_i32, %c0_i32_0 : i32, i32
  }
  func.func @transform_2(%arg0: i32) -> (i32, i32) {
    %c0_i32 = arith.constant 0 : i32
    %c0_i32_0 = arith.constant 0 : i32
    %c0_i32_1 = arith.constant 0 : i32
    return %c0_i32, %c0_i32_0 : i32, i32
  }
  func.func @transform_3(%arg0: i32) -> (i32, i32) {
    %c0_i32 = arith.constant 0 : i32
    %c0_i32_0 = arith.constant 0 : i32
    %c0_i32_1 = arith.constant 0 : i32
    return %c0_i32, %c0_i32_0 : i32, i32
  }
  func.func @transform_4(%arg0: i32) -> (i32, i32) {
    %c0_i32 = arith.constant 0 : i32
    %c0_i32_0 = arith.constant 0 : i32
    %c0_i32_1 = arith.constant 0 : i32
    return %c0_i32, %c0_i32_0 : i32, i32
  }
  func.func @transform_5(%arg0: i32) -> (i32, i32, i32) {
    %c0_i32 = arith.constant 0 : i32
    %c0_i32_0 = arith.constant 0 : i32
    %c0_i32_1 = arith.constant 0 : i32
    return %arg0, %c0_i32, %c0_i32_0 : i32, i32, i32
  }
}

</mosaic_0001>

<llo_original>
// kernel: tpu_custom_call.1
$region0: #{tpu_custom_call.1}
  #allocation0 [shape = 'u32[]', space=smem, size = 0x4, offset = 0x4, fixed_abs, tag = 'smem constant byte address 0x4 - core index']
  #allocation1 [shape = 'u32[144,128]{1,0:T(1,128)}', space=vmem, size = 0x12000, scoped, tag = 'internal scratch']
  #allocation2 [shape = 'f32[16,32]{1,0:T(8,128)}', space=vmem, size = 0x2000, scoped, tag = 'scratch operand']
  %s0 = inlined_call_operand.hbm [shape: f32[2,16,32], index: 0, kind: input, shape index: {}]
  %s1 = inlined_call_operand.hbm [shape: f32[32,96], index: 1, kind: input, shape index: {}]
  %s2 = inlined_call_operand.hbm [shape: f32[32,32], index: 2, kind: input, shape index: {}]
  %s3 = inlined_call_operand.vmem [shape: f32[1,96], index: 3, kind: input, shape index: {}]
  %s4 = inlined_call_operand.vmem [shape: f32[1,32], index: 4, kind: input, shape index: {}]
  %s5 = inlined_call_operand.hbm [shape: f32[2,16,32], index: 5, kind: output, shape index: {}]
  %s6 = sld [smem:[#allocation0]]
  $region65: #{tpu_custom_call.1} parent=0
    _
  %s8 = ssub.s32 1, %s6
  %s9 = scalar_select 0, %s8, %s6
  $region1: #{tpu_custom_call.1} parent=0
    #allocation3 [shape = 'u8[16384]{0}', space=vmem, size = 0x4000, scoped, tag = 'input window, operand 0']
    #allocation4 [shape = 's32[2]{0}', space=sflag, size = 0x8, scoped, tag = 'scoped memory for tpu_custom_call.1']
    #allocation5 [shape = 's32[2]{0}', space=sflag, size = 0x8, scoped, tag = 'scoped memory for tpu_custom_call.1']
    #allocation6 [shape = 'u8[16384]{0}', space=vmem, size = 0x4000, scoped, tag = 'input window, operand 1, single buffered']
    #allocation7 [shape = 's32[1]{0}', space=sflag, size = 0x4, scoped, tag = 'scoped memory for tpu_custom_call.1']
    #allocation8 [shape = 'u8[16384]{0}', space=vmem, size = 0x4000, scoped, tag = 'input window, operand 2, single buffered']
    #allocation9 [shape = 'u8[16384]{0}', space=vmem, size = 0x4000, scoped, tag = 'output window, operand 0']
    %10 = vsyncpa [#allocation4], 0
    %s11 = scalar_lea.sflag [#allocation4], 1
    %12 = vsyncpa %s11, 0
    %13 = vsyncpa [#allocation7], 0
    %14 = vsyncpa [#allocation5], 0
    %s15 = scalar_lea.sflag [#allocation5], 1
    %16 = vsyncpa %s15, 0
    loop: start=0, step=1, limit=4
    $region2: #{tpu_custom_call.1} parent=1 // loop_pre_header
      _
    $region3: #{tpu_custom_call.1} parent=1 // loop_header
      %s18 = sphi 0, %s22
      %p19 = scmp.ge.s32.totalorder %s18, 4
      %s28 = sphi 0, %s30
      %s31 = sphi 0, %s28
      %s32 = sphi 0, %s31
      %s48 = sphi 0, %s32
      %s52 = sphi 0, %s52
      %s54 = sphi 0, %s52
      %s55 = sphi 0, %s54
      %s69 = sphi 0, %s55
      %s73 = sphi 0, %s73
      %s75 = sphi 0, %s73
      %s76 = sphi 0, %s75
      %s90 = sphi 0, %s76
      %s94 = sphi 0, %s94
      %s96 = sphi 0, %s94
      %s97 = sphi 0, %s96
      %s111 = sphi 0, %s97
      %s115 = sphi 0, %s115
      %s117 = sphi 0, %s115
      %s118 = sphi 0, %s117
      %s132 = sphi 0, %s118
      %s138 = sphi 0, %s140
      %s141 = sphi 0, %s138
      %s142 = sphi 0, %s141
      %s158 = sphi 0, %s142
    $region4: #{tpu_custom_call.1} parent=1 // loop_header_branch
      %21 = sbr.rel (%p19) target = $region8
    $region5: #{tpu_custom_call.1} parent=1 // loop_body
      %s23 = ssub.s32 %s18, 1
      %s24 = ssub.s32 %s18, 2
      %s25 = sadd.s32 %s18, 1
      %s26 = ssub.s32 %s18, %s25
      %p27 = scmp.eq.s32.totalorder %s26, 0
      %s29 = sadd.s32 %s28, 1
      %s30 = scalar_select %p27, %s28, %s29
      %p33 = pneg %p27
      %p34 = scmp.eq.s32.totalorder %s18, 1
      %p35 = por %p33, %p34
      %p36 = scmp.ne.s32.totalorder %s28, %s31
      %p37 = scmp.eq.s32.totalorder %s18, 0
      %p38 = por %p36, %p37
      %p39 = scmp.ne.s32.totalorder %s28, %s31
      %p40 = scmp.eq.s32.totalorder %s23, 1
      %p41 = por %p39, %p40
      %p42 = scmp.ne.s32.totalorder %s31, %s32
      %p43 = scmp.eq.s32.totalorder %s23, 0
      %p44 = por %p42, %p43
      %p45 = scmp.ne.s32.totalorder %s31, %s32
      %p46 = scmp.eq.s32.totalorder %s24, 1
      %p47 = por %p45, %p46
      %p49 = scmp.ne.s32.totalorder %s32, %s48
      %p50 = scmp.eq.s32.totalorder %s24, 0
      %p51 = por %p49, %p50
      %s53 = sadd.s32 %s52, 1
      %p56 = scmp.eq.s32.totalorder %s18, 1
      %p57 = scmp.ne.s32.totalorder %s52, %s54
      %p58 = scmp.eq.s32.totalorder %s18, 0
      %p59 = por %p57, %p58
      %p60 = scmp.ne.s32.totalorder %s52, %s54
      %p61 = scmp.eq.s32.totalorder %s23, 1
      %p62 = por %p60, %p61
      %p63 = scmp.ne.s32.totalorder %s54, %s55
      %p64 = scmp.eq.s32.totalorder %s23, 0
      %p65 = por %p63, %p64
      %p66 = scmp.ne.s32.totalorder %s54, %s55
      %p67 = scmp.eq.s32.totalorder %s24, 1
      %p68 = por %p66, %p67
      %p70 = scmp.ne.s32.totalorder %s55, %s69
      %p71 = scmp.eq.s32.totalorder %s24, 0
      %p72 = por %p70, %p71
      %s74 = sadd.s32 %s73, 1
      %p77 = scmp.eq.s32.totalorder %s18, 1
      %p78 = scmp.ne.s32.totalorder %s73, %s75
      %p79 = scmp.eq.s32.totalorder %s18, 0
      %p80 = por %p78, %p79
      %p81 = scmp.ne.s32.totalorder %s73, %s75
      %p82 = scmp.eq.s32.totalorder %s23, 1
      %p83 = por %p81, %p82
      %p84 = scmp.ne.s32.totalorder %s75, %s76
      %p85 = scmp.eq.s32.totalorder %s23, 0
      %p86 = por %p84, %p85
      %p87 = scmp.ne.s32.totalorder %s75, %s76
      %p88 = scmp.eq.s32.totalorder %s24, 1
      %p89 = por %p87, %p88
      %p91 = scmp.ne.s32.totalorder %s76, %s90
      %p92 = scmp.eq.s32.totalorder %s24, 0
      %p93 = por %p91, %p92
      %s95 = sadd.s32 %s94, 1
      %p98 = scmp.eq.s32.totalorder %s18, 1
      %p99 = scmp.ne.s32.totalorder %s94, %s96
      %p100 = scmp.eq.s32.totalorder %s18, 0
      %p101 = por %p99, %p100
      %p102 = scmp.ne.s32.totalorder %s94, %s96
      %p103 = scmp.eq.s32.totalorder %s23, 1
      %p104 = por %p102, %p103
      %p105 = scmp.ne.s32.totalorder %s96, %s97
      %p106 = scmp.eq.s32.totalorder %s23, 0
      %p107 = por %p105, %p106
      %p108 = scmp.ne.s32.totalorder %s96, %s97
      %p109 = scmp.eq.s32.totalorder %s24, 1
      %p110 = por %p108, %p109
      %p112 = scmp.ne.s32.totalorder %s97, %s111
      %p113 = scmp.eq.s32.totalorder %s24, 0
      %p114 = por %p112, %p113
      %s116 = sadd.s32 %s115, 1
      %p119 = scmp.eq.s32.totalorder %s18, 1
      %p120 = scmp.ne.s32.totalorder %s115, %s117
      %p121 = scmp.eq.s32.totalorder %s18, 0
      %p122 = por %p120, %p121
      %p123 = scmp.ne.s32.totalorder %s115, %s117
      %p124 = scmp.eq.s32.totalorder %s23, 1
      %p125 = por %p123, %p124
      %p126 = scmp.ne.s32.totalorder %s117, %s118
      %p127 = scmp.eq.s32.totalorder %s23, 0
      %p128 = por %p126, %p127
      %p129 = scmp.ne.s32.totalorder %s117, %s118
      %p130 = scmp.eq.s32.totalorder %s24, 1
      %p131 = por %p129, %p130
      %p133 = scmp.ne.s32.totalorder %s118, %s132
      %p134 = scmp.eq.s32.totalorder %s24, 0
      %p135 = por %p133, %p134
      %s136 = ssub.s32 %s18, %s25
      %p137 = scmp.eq.s32.totalorder %s136, 0
      %s139 = sadd.s32 %s138, 1
      %s140 = scalar_select %p137, %s138, %s139
      %p143 = pneg %p137
      %p144 = scmp.eq.s32.totalorder %s18, 1
      %p145 = por %p143, %p144
      %p146 = scmp.ne.s32.totalorder %s138, %s141
      %p147 = scmp.eq.s32.totalorder %s18, 0
      %p148 = por %p146, %p147
      %p149 = scmp.ne.s32.totalorder %s138, %s141
      %p150 = scmp.eq.s32.totalorder %s23, 1
      %p151 = por %p149, %p150
      %p152 = scmp.ne.s32.totalorder %s141, %s142
      %p153 = scmp.eq.s32.totalorder %s23, 0
      %p154 = por %p152, %p153
      %p155 = scmp.ne.s32.totalorder %s141, %s142
      %p156 = scmp.eq.s32.totalorder %s24, 1
      %p157 = por %p155, %p156
      %p159 = scmp.ne.s32.totalorder %s142, %s158
      %p160 = scmp.eq.s32.totalorder %s24, 0
      %p161 = por %p159, %p160
      %p162 = scmp.le.s32.totalorder 1, %s18
      %p163 = scmp.lt.s32.totalorder %s18, 3
      %p164 = pnand %p162, %p163
      %p165 = pneg %p164
      // Predicated region
      $region9: #{tpu_custom_call.1} parent=5 // pred_check
        _
      $region10: #{tpu_custom_call.1} parent=5 // pred_check_branch
        %167 = sbr.rel (%p164) target = $region12
      $region11: #{tpu_custom_call.1} parent=5 // pred_region
        %s168 = ssub.s32 %s18, 1
        // Predicated region
        $region13: #{tpu_custom_call.1} parent=11 // pred_check
          %p169 = pneg %p65
        $region14: #{tpu_custom_call.1} parent=11 // pred_check_branch
          %171 = sbr.rel (%p169) target = $region16
        $region15: #{tpu_custom_call.1} parent=11 // pred_region
          %s173 = ssub.s32 512, 512
          %174 = vsyncadd [#allocation7], %s173
          %s175 = sshll.u32 [#allocation6], 4
          %s176 = int_to_ptr.vmem [resolvable:$true] %s175
          %181 = dma.hbm_to_vmem [thread:$0]  %s1, 512, %s176, [#allocation7], 128, 128, 8
        $region16: #{tpu_custom_call.1} parent=11 // pred_fallthru
          _
        // Predicated region
        $region17: #{tpu_custom_call.1} parent=11 // pred_check
          %p182 = pneg %p86
        $region18: #{tpu_custom_call.1} parent=11 // pred_check_branch
          %184 = sbr.rel (%p182) target = $region20
        $region19: #{tpu_custom_call.1} parent=11 // pred_region
          %s186 = ssub.s32 512, 512
          %187 = vsyncadd [#allocation7], %s186
          %s188 = sshll.u32 [#allocation8], 4
          %s189 = int_to_ptr.vmem [resolvable:$true] %s188
          %194 = dma.hbm_to_vmem [thread:$0]  %s2, 512, %s189, [#allocation7], 128, 128, 8
        $region20: #{tpu_custom_call.1} parent=11 // pred_fallthru
          _
        // Predicated region
        $region21: #{tpu_custom_call.1} parent=11 // pred_check
          %p195 = pneg %p107
        $region22: #{tpu_custom_call.1} parent=11 // pred_check_branch
          %197 = sbr.rel (%p195) target = $region24
        $region23: #{tpu_custom_call.1} parent=11 // pred_region
          _
        $region24: #{tpu_custom_call.1} parent=11 // pred_fallthru
          _
        // Predicated region
        $region25: #{tpu_custom_call.1} parent=11 // pred_check
          %p198 = pneg %p128
        $region26: #{tpu_custom_call.1} parent=11 // pred_check_branch
          %200 = sbr.rel (%p198) target = $region28
        $region27: #{tpu_custom_call.1} parent=11 // pred_region
          _
        $region28: #{tpu_custom_call.1} parent=11 // pred_fallthru
          _
      $region12: #{tpu_custom_call.1} parent=5 // pred_fallthru
        _
      %p201 = scmp.lt.s32.totalorder %s18, 2
      // Predicated region
      $region29: #{tpu_custom_call.1} parent=5 // pred_check
        %p202 = pneg %p201
      $region30: #{tpu_custom_call.1} parent=5 // pred_check_branch
        %204 = sbr.rel (%p202) target = $region32
      $region31: #{tpu_custom_call.1} parent=5 // pred_region
        // Predicated region
        $region33: #{tpu_custom_call.1} parent=31 // pred_check
          %p205 = pneg %p38
        $region34: #{tpu_custom_call.1} parent=31 // pred_check_branch
          %207 = sbr.rel (%p205) target = $region36
        $region35: #{tpu_custom_call.1} parent=31 // pred_region
          %s208 = sand.u32 %s28, 1
          %s209 = scalar_lea.sflag [#allocation4], %s208
          %s210 = sand.u32 %s28, 1
          %s211 = smul.addr %s210, 16
          %s212 = scalar_lea.vmem [#allocation3], %s211
          %s214 = ssub.s32 256, 256
          %215 = vsyncadd %s209, %s214
          %s216 = smul.addr %s18, 2
          %s217 = smul.addr %s216, 128
          %s218 = scalar_lea.hbm %s0, %s217
          %s219 = sshll.u32 %s212, 4
          %s220 = int_to_ptr.vmem [resolvable:$true] %s219
          %225 = dma.hbm_to_vmem [thread:$0]  %s218, 256, %s220, %s209, 128, 128, 8
        $region36: #{tpu_custom_call.1} parent=31 // pred_fallthru
          _
      $region32: #{tpu_custom_call.1} parent=5 // pred_fallthru
        _
      %p226 = scmp.le.s32.totalorder 1, %s18
      %p227 = scmp.lt.s32.totalorder %s18, 3
      %p228 = pnand %p226, %p227
      %p229 = pneg %p228
      // Predicated region
      $region37: #{tpu_custom_call.1} parent=5 // pred_check
        _
      $region38: #{tpu_custom_call.1} parent=5 // pred_check_branch
        %231 = sbr.rel (%p228) target = $region40
      $region39: #{tpu_custom_call.1} parent=5 // pred_region
        %s232 = ssub.s32 %s18, 1
        %s233 = sand.u32 %s31, 1
        %s234 = scalar_lea.sflag [#allocation4], %s233
        %s235 = sand.u32 %s31, 1
        %s236 = smul.addr %s235, 16
        %s237 = scalar_lea.vmem [#allocation3], %s236
        // Predicated region
        $region41: #{tpu_custom_call.1} parent=39 // pred_check
          %p238 = pneg %p44
        $region42: #{tpu_custom_call.1} parent=39 // pred_check_branch
          %240 = sbr.rel (%p238) target = $region44
        $region43: #{tpu_custom_call.1} parent=39 // pred_region
          %241 = dma.done %s234, 256
        $region44: #{tpu_custom_call.1} parent=39 // pred_fallthru
          _
        // Predicated region
        $region45: #{tpu_custom_call.1} parent=39 // pred_check
          %p242 = pneg %p65
        $region46: #{tpu_custom_call.1} parent=39 // pred_check_branch
          %244 = sbr.rel (%p242) target = $region48
        $region47: #{tpu_custom_call.1} parent=39 // pred_region
          %245 = dma.done [#allocation7], 512
        $region48: #{tpu_custom_call.1} parent=39 // pred_fallthru
          _
        // Predicated region
        $region49: #{tpu_custom_call.1} parent=39 // pred_check
          %p246 = pneg %p86
        $region50: #{tpu_custom_call.1} parent=39 // pred_check_branch
          %248 = sbr.rel (%p246) target = $region52
        $region51: #{tpu_custom_call.1} parent=39 // pred_region
          %249 = dma.done [#allocation7], 512
        $region52: #{tpu_custom_call.1} parent=39 // pred_fallthru
          _
        %s250 = sand.u32 %s31, 1
        %s251 = scalar_lea.sflag [#allocation4], %s250
        %s252 = sand.u32 %s31, 1
        %s253 = smul.addr %s252, 16
        %s254 = scalar_lea.vmem [#allocation3], %s253
        %p255 = pneg %p44
        %p256 = pneg %p41
        %p257 = pneg %p65
        %p258 = pneg %p62
        %p259 = pneg %p86
        %p260 = pneg %p83
        %p261 = pneg %p107
        %p262 = pneg %p104
        %p263 = pneg %p128
        %p264 = pneg %p125
        %p265 = pneg %p154
        %p266 = pneg %p151
        %s267 = sand.u32 %s141, 1
        %s268 = scalar_lea.sflag [#allocation5], %s267
        %s269 = sand.u32 %s141, 1
        %s270 = smul.addr %s269, 16
        %s271 = scalar_lea.vmem [#allocation9], %s270
        %v272 = vld [vmem:[%s237] sm:$0xff]
        %v273 = vld [vmem:[%s237 + $0x8] sm:$0xff]
        %v274 = vld [vmem:[#allocation6] sm:$0xff]
        %v275 = vld [vmem:[#allocation6 + $0x8] sm:$0xff]
        %v276 = vld [vmem:[#allocation6 + $0x10] sm:$0xff]
        %v277 = vld [vmem:[#allocation6 + $0x18] sm:$0xff]
        %v278 = vld [vmem:[%s3] sm:$0x1]
        %v280 = vlaneseq
        %v281 = vshrl.u32 %v280, 7
        %v282 = vsub.s32 0, %v281
        %v283 = vrot.slane %v278, %v282
        %vm285 = vcmask 261120
        %v287 = vsel %vm285, %v272, 0
        %v290 = vsel %vm285, %v273, 0
        %292 = vmatprep.subr.mxu0 0.0
        %293 = vmatpush1.msra.mxu0 %v274
        %294 = vmatprep.subr.mxu0 0.0
        %295 = vmatpush1.msra.mxu0 %v275
        %296 = vmatprep.subr.mxu0 0.0
        %297 = vmatpush1.msra.mxu0 %v276
        %298 = vmatprep.subr.mxu0 0.0
        %299 = vmatpush1.msra.mxu0 %v277
        %300 = vmatprep.subr.mxu0 0.0
        %301 = vmatpush1.msra.mxu0 0.0
        %302 = vmatprep.subr.mxu0 0.0
        %303 = vmatpush1.msra.mxu0 0.0
        %304 = vmatprep.subr.mxu0 0.0
        %305 = vmatpush1.msra.mxu0 0.0
        %306 = vmatprep.subr.mxu0 0.0
        %307 = vmatpush1.msra.mxu0 0.0
        %308 = vmatprep.subr.mxu0 0.0
        %309 = vmatpush1.msra.mxu0 0.0
        %310 = vmatprep.subr.mxu0 0.0
        %311 = vmatpush1.msra.mxu0 0.0
        %312 = vmatprep.subr.mxu0 0.0
        %313 = vmatpush1.msra.mxu0 0.0
        %314 = vmatprep.subr.mxu0 0.0
        %315 = vmatpush1.msra.mxu0 0.0
        %316 = vmatprep.subr.mxu0 0.0
        %317 = vmatpush1.msra.mxu0 0.0
        %318 = vmatprep.subr.mxu0 0.0
        %319 = vmatpush1.msra.mxu0 0.0
        %320 = vmatprep.subr.mxu0 0.0
        %321 = vmatpush1.msra.mxu0 0.0
        %322 = vmatprep.subr.mxu0 0.0
        %323 = vmatpush1.msra.mxu0 0.0
        %324 = vmatprep.subr.mxu0 0.0
        %325 = vmatpush1.msra.mxu0 0.0
        %326 = vmatprep.subr.mxu0 0.0
        %327 = vmatpush1.msra.mxu0 0.0
        %328 = vmatprep.subr.mxu0 0.0
        %329 = vmatpush1.msra.mxu0 0.0
        %330 = vmatprep.subr.mxu0 0.0
        %331 = vmatpush1.msra.mxu0 0.0
        %332 = vmatprep.subr.mxu0 0.0
        %333 = vmatpush1.msra.mxu0 0.0
        %334 = vmatprep.subr.mxu0 0.0
        %335 = vmatpush1.msra.mxu0 0.0
        %336 = vmatprep.subr.mxu0 0.0
        %337 = vmatpush1.msra.mxu0 0.0
        %338 = vmatprep.subr.mxu0 0.0
        %339 = vmatpush1.msra.mxu0 0.0
        %340 = vmatprep.subr.mxu0 0.0
        %341 = vmatpush1.msra.mxu0 0.0
        %342 = vmatprep.subr.mxu0 0.0
        %343 = vmatpush1.msra.mxu0 0.0
        %344 = vmatprep.subr.mxu0 0.0
        %345 = vmatpush1.msra.mxu0 0.0
        %346 = vmatprep.subr.mxu0 0.0
        %347 = vmatpush1.msra.mxu0 0.0
        %348 = vmatprep.subr.mxu0 0.0
        %349 = vmatpush1.msra.mxu0 0.0
        %350 = vmatprep.subr.mxu0 0.0
        %351 = vmatpush1.msra.mxu0 0.0
        %352 = vmatprep.subr.mxu0 0.0
        %353 = vmatpush1.msra.mxu0 0.0
        %354 = vmatprep.subr.mxu0 0.0
        %355 = vmatpush1.msra.mxu0 0.0
        %356 = vmatprep.mubr.f32.mxu0 0.0
        %357 = vmatmul.mubr.f32.gmra.mrb[0].mxu0 %v287
        %v358 = vpop.f32.mrb[0].mxu0
        %v359 = vadd.f32 %v283, %v358
        %v360 = vpop.f32.mrb[0].mxu0
        %361 = vmatprep.mubr.f32.mxu0 0.0
        %362 = vmatmul.mubr.f32.gmra.mrb[0].mxu0 %v290
        %v363 = vpop.f32.mrb[0].mxu0
        %v364 = vadd.f32 %v283, %v363
        %v365 = vpop.f32.mrb[0].mxu0
        %366 = vdwg.mxu0
        %v367 = vmul.f32 %v359, 0.35355338
        %v368 = vmul.f32 %v364, 0.35355338
        %371 = vrot.lane.b32.xlu0 %v359, 96
        %v372 = vpop.permute.xlu0 %371
        %373 = vrot.lane.b32.xlu0 %v364, 96
        %v374 = vpop.permute.xlu0 %373
        %vm375 = vcmask 64512
        %v377 = vsel %vm375, %v367, 0
        %v380 = vsel %vm375, %v368, 0
        %v382 = vsel %vm375, %v372, 0
        %v384 = vsel %vm375, %v374, 0
        %386 = vmatprep.subr.mxu0 0.0
        %387 = vmatpush1.xpose.msra.mxu0 %v382
        %388 = vmatprep.subr.mxu0 0.0
        %389 = vmatpush1.xpose.msra.mxu0 %v384
        %390 = vmatprep.subr.mxu0 0.0
        %391 = vmatpush1.xpose.msra.mxu0 0.0
        %392 = vmatprep.subr.mxu0 0.0
        %393 = vmatpush1.xpose.msra.mxu0 0.0
        %394 = vmatprep.subr.mxu0 0.0
        %395 = vmatpush1.xpose.msra.mxu0 0.0
        %396 = vmatprep.subr.mxu0 0.0
        %397 = vmatpush1.xpose.msra.mxu0 0.0
        %398 = vmatprep.subr.mxu0 0.0
        %399 = vmatpush1.xpose.msra.mxu0 0.0
        %400 = vmatprep.subr.mxu0 0.0
        %401 = vmatpush1.xpose.msra.mxu0 0.0
        %402 = vmatprep.subr.mxu0 0.0
        %403 = vmatpush1.xpose.msra.mxu0 0.0
        %404 = vmatprep.subr.mxu0 0.0
        %405 = vmatpush1.xpose.msra.mxu0 0.0
        %406 = vmatprep.subr.mxu0 0.0
        %407 = vmatpush1.xpose.msra.mxu0 0.0
        %408 = vmatprep.subr.mxu0 0.0
        %409 = vmatpush1.xpose.msra.mxu0 0.0
        %410 = vmatprep.subr.mxu0 0.0
        %411 = vmatpush1.xpose.msra.mxu0 0.0
        %412 = vmatprep.subr.mxu0 0.0
        %413 = vmatpush1.xpose.msra.mxu0 0.0
        %414 = vmatprep.subr.mxu0 0.0
        %415 = vmatpush1.xpose.msra.mxu0 0.0
        %416 = vmatprep.subr.mxu0 0.0
        %417 = vmatpush1.xpose.msra.mxu0 0.0
        %418 = vmatprep.subr.mxu0 0.0
        %419 = vmatpush1.xpose.msra.mxu0 0.0
        %420 = vmatprep.subr.mxu0 0.0
        %421 = vmatpush1.xpose.msra.mxu0 0.0
        %422 = vmatprep.subr.mxu0 0.0
        %423 = vmatpush1.xpose.msra.mxu0 0.0
        %424 = vmatprep.subr.mxu0 0.0
        %425 = vmatpush1.xpose.msra.mxu0 0.0
        %426 = vmatprep.subr.mxu0 0.0
        %427 = vmatpush1.xpose.msra.mxu0 0.0
        %428 = vmatprep.subr.mxu0 0.0
        %429 = vmatpush1.xpose.msra.mxu0 0.0
        %430 = vmatprep.subr.mxu0 0.0
        %431 = vmatpush1.xpose.msra.mxu0 0.0
        %432 = vmatprep.subr.mxu0 0.0
        %433 = vmatpush1.xpose.msra.mxu0 0.0
        %434 = vmatprep.subr.mxu0 0.0
        %435 = vmatpush1.xpose.msra.mxu0 0.0
        %436 = vmatprep.subr.mxu0 0.0
        %437 = vmatpush1.xpose.msra.mxu0 0.0
        %438 = vmatprep.subr.mxu0 0.0
        %439 = vmatpush1.xpose.msra.mxu0 0.0
        %440 = vmatprep.subr.mxu0 0.0
        %441 = vmatpush1.xpose.msra.mxu0 0.0
        %442 = vmatprep.subr.mxu0 0.0
        %443 = vmatpush1.xpose.msra.mxu0 0.0
        %444 = vmatprep.subr.mxu0 0.0
        %445 = vmatpush1.xpose.msra.mxu0 0.0
        %446 = vmatprep.subr.mxu0 0.0
        %447 = vmatpush1.xpose.msra.mxu0 0.0
        %448 = vmatprep.subr.mxu0 0.0
        %449 = vmatpush1.xpose.msra.mxu0 0.0
        %450 = vmatprep.mubr.f32.mxu0 0.0
        %451 = vmatmul.mubr.f32.gmra.mrb[0].mxu0 %v377
        %v452 = vpop.f32.mrb[0].mxu0
        %v453 = vadd.f32 0.0, %v452
        %v454 = vpop.f32.mrb[0].mxu0
        %455 = vmatprep.mubr.f32.mxu0 0.0
        %456 = vmatmul.mubr.f32.gmra.mrb[0].mxu0 %v380
        %v457 = vpop.f32.mrb[0].mxu0
        %v458 = vadd.f32 0.0, %v457
        %v459 = vpop.f32.mrb[0].mxu0
        %460 = vdwg.mxu0
        %vm461 = vcmask 130048
        %v462 = vsel %vm461, %v453, -inf
        %463 = vmax.xlane.f32.xlu0 %v462
        %v464 = vpop.xlane.xlu0 %463
        %v465 = vsel %vm461, %v458, -inf
        %466 = vmax.xlane.f32.xlu0 %v465
        %v467 = vpop.xlane.xlu0 %466
        %v468 = vsub.f32 %v453, %v464
        %v469 = vsub.f32 %v458, %v467
        %v470 = vmul.f32 %v468, 1.442695
        %v471 = vpow.pop %v470
        %v472 = vmul.f32 %v469, 1.442695
        %v473 = vpow.pop %v472
        %v474 = vsel %vm461, %v471, 0.0
        %475 = vadd.xlane.f32.xlu0 %v474
        %v476 = vpop.xlane.xlu0 %475
        %v477 = vsel %vm461, %v473, 0.0
        %478 = vadd.xlane.f32.xlu0 %v477
        %v479 = vpop.xlane.xlu0 %478
        %480 = vrot.lane.b32.xlu0 %v359, 64
        %v481 = vpop.permute.xlu0 %480
        %482 = vrot.lane.b32.xlu0 %v364, 64
        %v483 = vpop.permute.xlu0 %482
        %v487 = vsel %vm461, %v471, 0
        %v490 = vsel %vm461, %v473, 0
        %492 = vmatprep.subr.mxu0 0.0
        %493 = vmatpush1.msra.mxu0 %v481
        %494 = vmatprep.subr.mxu0 0.0
        %495 = vmatpush1.msra.mxu0 %v483
        %496 = vmatprep.subr.mxu0 0.0
        %497 = vmatpush1.msra.mxu0 0.0
        %498 = vmatprep.subr.mxu0 0.0
        %499 = vmatpush1.msra.mxu0 0.0
        %500 = vmatprep.subr.mxu0 0.0
        %501 = vmatpush1.msra.mxu0 0.0
        %502 = vmatprep.subr.mxu0 0.0
        %503 = vmatpush1.msra.mxu0 0.0
        %504 = vmatprep.subr.mxu0 0.0
        %505 = vmatpush1.msra.mxu0 0.0
        %506 = vmatprep.subr.mxu0 0.0
        %507 = vmatpush1.msra.mxu0 0.0
        %508 = vmatprep.subr.mxu0 0.0
        %509 = vmatpush1.msra.mxu0 0.0
        %510 = vmatprep.subr.mxu0 0.0
        %511 = vmatpush1.msra.mxu0 0.0
        %512 = vmatprep.subr.mxu0 0.0
        %513 = vmatpush1.msra.mxu0 0.0
        %514 = vmatprep.subr.mxu0 0.0
        %515 = vmatpush1.msra.mxu0 0.0
        %516 = vmatprep.subr.mxu0 0.0
        %517 = vmatpush1.msra.mxu0 0.0
        %518 = vmatprep.subr.mxu0 0.0
        %519 = vmatpush1.msra.mxu0 0.0
        %520 = vmatprep.subr.mxu0 0.0
        %521 = vmatpush1.msra.mxu0 0.0
        %522 = vmatprep.subr.mxu0 0.0
        %523 = vmatpush1.msra.mxu0 0.0
        %524 = vmatprep.subr.mxu0 0.0
        %525 = vmatpush1.msra.mxu0 0.0
        %526 = vmatprep.subr.mxu0 0.0
        %527 = vmatpush1.msra.mxu0 0.0
        %528 = vmatprep.subr.mxu0 0.0
        %529 = vmatpush1.msra.mxu0 0.0
        %530 = vmatprep.subr.mxu0 0.0
        %531 = vmatpush1.msra.mxu0 0.0
        %532 = vmatprep.subr.mxu0 0.0
        %533 = vmatpush1.msra.mxu0 0.0
        %534 = vmatprep.subr.mxu0 0.0
        %535 = vmatpush1.msra.mxu0 0.0
        %536 = vmatprep.subr.mxu0 0.0
        %537 = vmatpush1.msra.mxu0 0.0
        %538 = vmatprep.subr.mxu0 0.0
        %539 = vmatpush1.msra.mxu0 0.0
        %540 = vmatprep.subr.mxu0 0.0
        %541 = vmatpush1.msra.mxu0 0.0
        %542 = vmatprep.subr.mxu0 0.0
        %543 = vmatpush1.msra.mxu0 0.0
        %544 = vmatprep.subr.mxu0 0.0
        %545 = vmatpush1.msra.mxu0 0.0
        %546 = vmatprep.subr.mxu0 0.0
        %547 = vmatpush1.msra.mxu0 0.0
        %548 = vmatprep.subr.mxu0 0.0
        %549 = vmatpush1.msra.mxu0 0.0
        %550 = vmatprep.subr.mxu0 0.0
        %551 = vmatpush1.msra.mxu0 0.0
        %552 = vmatprep.subr.mxu0 0.0
        %553 = vmatpush1.msra.mxu0 0.0
        %554 = vmatprep.subr.mxu0 0.0
        %555 = vmatpush1.msra.mxu0 0.0
        %556 = vmatprep.mubr.f32.mxu0 0.0
        %557 = vmatmul.mubr.f32.gmra.mrb[0].mxu0 %v487
        %v558 = vpop.f32.mrb[0].mxu0
        %v559 = vadd.f32 0.0, %v558
        %v560 = vpop.f32.mrb[0].mxu0
        %561 = vmatprep.mubr.f32.mxu0 0.0
        %562 = vmatmul.mubr.f32.gmra.mrb[0].mxu0 %v490
        %v563 = vpop.f32.mrb[0].mxu0
        %v564 = vadd.f32 0.0, %v563
        %v565 = vpop.f32.mrb[0].mxu0
        %566 = vdwg.mxu0
        %v567 = vrcp.pop %v476
        %v568 = vmul.f32 1.0, %v567
        %v569 = vrcp.pop %v479
        %v570 = vmul.f32 1.0, %v569
        %v571 = vmul.f32 %v559, %v568
        %v572 = vmul.f32 %v564, %v570
        %573 = vst.msk [vmem:[#allocation2] sm:$0xff] %vm375, %v571
        %574 = vst.msk [vmem:[#allocation2 + $0x8] sm:$0xff] %vm375, %v572
        %575 = vrot.lane.b32.xlu0 %v367, 120
        %v576 = vpop.permute.xlu0 %575
        %577 = vrot.lane.b32.xlu0 %v368, 120
        %v578 = vpop.permute.xlu0 %577
        %579 = vrot.lane.b32.xlu0 %v359, 88
        %v580 = vpop.permute.xlu0 %579
        %581 = vrot.lane.b32.xlu0 %v364, 88
        %v582 = vpop.permute.xlu0 %581
        %v583 = vsel %vm375, %v576, 0
        %v585 = vsel %vm375, %v578, 0
        %v587 = vsel %vm375, %v580, 0
        %v589 = vsel %vm375, %v582, 0
        %591 = vmatprep.subr.mxu0 0.0
        %592 = vmatpush1.xpose.msra.mxu0 %v587
        %593 = vmatprep.subr.mxu0 0.0
        %594 = vmatpush1.xpose.msra.mxu0 %v589
        %595 = vmatprep.subr.mxu0 0.0
        %596 = vmatpush1.xpose.msra.mxu0 0.0
        %597 = vmatprep.subr.mxu0 0.0
        %598 = vmatpush1.xpose.msra.mxu0 0.0
        %599 = vmatprep.subr.mxu0 0.0
        %600 = vmatpush1.xpose.msra.mxu0 0.0
        %601 = vmatprep.subr.mxu0 0.0
        %602 = vmatpush1.xpose.msra.mxu0 0.0
        %603 = vmatprep.subr.mxu0 0.0
        %604 = vmatpush1.xpose.msra.mxu0 0.0
        %605 = vmatprep.subr.mxu0 0.0
        %606 = vmatpush1.xpose.msra.mxu0 0.0
        %607 = vmatprep.subr.mxu0 0.0
        %608 = vmatpush1.xpose.msra.mxu0 0.0
        %609 = vmatprep.subr.mxu0 0.0
        %610 = vmatpush1.xpose.msra.mxu0 0.0
        %611 = vmatprep.subr.mxu0 0.0
        %612 = vmatpush1.xpose.msra.mxu0 0.0
        %613 = vmatprep.subr.mxu0 0.0
        %614 = vmatpush1.xpose.msra.mxu0 0.0
        %615 = vmatprep.subr.mxu0 0.0
        %616 = vmatpush1.xpose.msra.mxu0 0.0
        %617 = vmatprep.subr.mxu0 0.0
        %618 = vmatpush1.xpose.msra.mxu0 0.0
        %619 = vmatprep.subr.mxu0 0.0
        %620 = vmatpush1.xpose.msra.mxu0 0.0
        %621 = vmatprep.subr.mxu0 0.0
        %622 = vmatpush1.xpose.msra.mxu0 0.0
        %623 = vmatprep.subr.mxu0 0.0
        %624 = vmatpush1.xpose.msra.mxu0 0.0
        %625 = vmatprep.subr.mxu0 0.0
        %626 = vmatpush1.xpose.msra.mxu0 0.0
        %627 = vmatprep.subr.mxu0 0.0
        %628 = vmatpush1.xpose.msra.mxu0 0.0
        %629 = vmatprep.subr.mxu0 0.0
        %630 = vmatpush1.xpose.msra.mxu0 0.0
        %631 = vmatprep.subr.mxu0 0.0
        %632 = vmatpush1.xpose.msra.mxu0 0.0
        %633 = vmatprep.subr.mxu0 0.0
        %634 = vmatpush1.xpose.msra.mxu0 0.0
        %635 = vmatprep.subr.mxu0 0.0
        %636 = vmatpush1.xpose.msra.mxu0 0.0
        %637 = vmatprep.subr.mxu0 0.0
        %638 = vmatpush1.xpose.msra.mxu0 0.0
        %639 = vmatprep.subr.mxu0 0.0
        %640 = vmatpush1.xpose.msra.mxu0 0.0
        %641 = vmatprep.subr.mxu0 0.0
        %642 = vmatpush1.xpose.msra.mxu0 0.0
        %643 = vmatprep.subr.mxu0 0.0
        %644 = vmatpush1.xpose.msra.mxu0 0.0
        %645 = vmatprep.subr.mxu0 0.0
        %646 = vmatpush1.xpose.msra.mxu0 0.0
        %647 = vmatprep.subr.mxu0 0.0
        %648 = vmatpush1.xpose.msra.mxu0 0.0
        %649 = vmatprep.subr.mxu0 0.0
        %650 = vmatpush1.xpose.msra.mxu0 0.0
        %651 = vmatprep.subr.mxu0 0.0
        %652 = vmatpush1.xpose.msra.mxu0 0.0
        %653 = vmatprep.subr.mxu0 0.0
        %654 = vmatpush1.xpose.msra.mxu0 0.0
        %655 = vmatprep.mubr.f32.mxu0 0.0
        %656 = vmatmul.mubr.f32.gmra.mrb[0].mxu0 %v583
        %v657 = vpop.f32.mrb[0].mxu0
        %v658 = vadd.f32 0.0, %v657
        %v659 = vpop.f32.mrb[0].mxu0
        %660 = vmatprep.mubr.f32.mxu0 0.0
        %661 = vmatmul.mubr.f32.gmra.mrb[0].mxu0 %v585
        %v662 = vpop.f32.mrb[0].mxu0
        %v663 = vadd.f32 0.0, %v662
        %v664 = vpop.f32.mrb[0].mxu0
        %665 = vdwg.mxu0
        %v666 = vsel %vm461, %v658, -inf
        %667 = vmax.xlane.f32.xlu0 %v666
        %v668 = vpop.xlane.xlu0 %667
        %v669 = vsel %vm461, %v663, -inf
        %670 = vmax.xlane.f32.xlu0 %v669
        %v671 = vpop.xlane.xlu0 %670
        %v672 = vsub.f32 %v658, %v668
        %v673 = vsub.f32 %v663, %v671
        %v674 = vmul.f32 %v672, 1.442695
        %v675 = vpow.pop %v674
        %v676 = vmul.f32 %v673, 1.442695
        %v677 = vpow.pop %v676
        %v678 = vsel %vm461, %v675, 0.0
        %679 = vadd.xlane.f32.xlu0 %v678
        %v680 = vpop.xlane.xlu0 %679
        %v681 = vsel %vm461, %v677, 0.0
        %682 = vadd.xlane.f32.xlu0 %v681
        %v683 = vpop.xlane.xlu0 %682
        %684 = vrot.lane.b32.xlu0 %v359, 56
        %v685 = vpop.permute.xlu0 %684
        %686 = vrot.lane.b32.xlu0 %v364, 56
        %v687 = vpop.permute.xlu0 %686
        %v691 = vsel %vm461, %v675, 0
        %v694 = vsel %vm461, %v677, 0
        %696 = vmatprep.subr.mxu0 0.0
        %697 = vmatpush1.msra.mxu0 %v685
        %698 = vmatprep.subr.mxu0 0.0
        %699 = vmatpush1.msra.mxu0 %v687
        %700 = vmatprep.subr.mxu0 0.0
        %701 = vmatpush1.msra.mxu0 0.0
        %702 = vmatprep.subr.mxu0 0.0
        %703 = vmatpush1.msra.mxu0 0.0
        %704 = vmatprep.subr.mxu0 0.0
        %705 = vmatpush1.msra.mxu0 0.0
        %706 = vmatprep.subr.mxu0 0.0
        %707 = vmatpush1.msra.mxu0 0.0
        %708 = vmatprep.subr.mxu0 0.0
        %709 = vmatpush1.msra.mxu0 0.0
        %710 = vmatprep.subr.mxu0 0.0
        %711 = vmatpush1.msra.mxu0 0.0
        %712 = vmatprep.subr.mxu0 0.0
        %713 = vmatpush1.msra.mxu0 0.0
        %714 = vmatprep.subr.mxu0 0.0
        %715 = vmatpush1.msra.mxu0 0.0
        %716 = vmatprep.subr.mxu0 0.0
        %717 = vmatpush1.msra.mxu0 0.0
        %718 = vmatprep.subr.mxu0 0.0
        %719 = vmatpush1.msra.mxu0 0.0
        %720 = vmatprep.subr.mxu0 0.0
        %721 = vmatpush1.msra.mxu0 0.0
        %722 = vmatprep.subr.mxu0 0.0
        %723 = vmatpush1.msra.mxu0 0.0
        %724 = vmatprep.subr.mxu0 0.0
        %725 = vmatpush1.msra.mxu0 0.0
        %726 = vmatprep.subr.mxu0 0.0
        %727 = vmatpush1.msra.mxu0 0.0
        %728 = vmatprep.subr.mxu0 0.0
        %729 = vmatpush1.msra.mxu0 0.0
        %730 = vmatprep.subr.mxu0 0.0
        %731 = vmatpush1.msra.mxu0 0.0
        %732 = vmatprep.subr.mxu0 0.0
        %733 = vmatpush1.msra.mxu0 0.0
        %734 = vmatprep.subr.mxu0 0.0
        %735 = vmatpush1.msra.mxu0 0.0
        %736 = vmatprep.subr.mxu0 0.0
        %737 = vmatpush1.msra.mxu0 0.0
        %738 = vmatprep.subr.mxu0 0.0
        %739 = vmatpush1.msra.mxu0 0.0
        %740 = vmatprep.subr.mxu0 0.0
        %741 = vmatpush1.msra.mxu0 0.0
        %742 = vmatprep.subr.mxu0 0.0
        %743 = vmatpush1.msra.mxu0 0.0
        %744 = vmatprep.subr.mxu0 0.0
        %745 = vmatpush1.msra.mxu0 0.0
        %746 = vmatprep.subr.mxu0 0.0
        %747 = vmatpush1.msra.mxu0 0.0
        %748 = vmatprep.subr.mxu0 0.0
        %749 = vmatpush1.msra.mxu0 0.0
        %750 = vmatprep.subr.mxu0 0.0
        %751 = vmatpush1.msra.mxu0 0.0
        %752 = vmatprep.subr.mxu0 0.0
        %753 = vmatpush1.msra.mxu0 0.0
        %754 = vmatprep.subr.mxu0 0.0
        %755 = vmatpush1.msra.mxu0 0.0
        %756 = vmatprep.subr.mxu0 0.0
        %757 = vmatpush1.msra.mxu0 0.0
        %758 = vmatprep.subr.mxu0 0.0
        %759 = vmatpush1.msra.mxu0 0.0
        %760 = vmatprep.mubr.f32.mxu0 0.0
        %761 = vmatmul.mubr.f32.gmra.mrb[0].mxu0 %v691
        %v762 = vpop.f32.mrb[0].mxu0
        %v763 = vadd.f32 0.0, %v762
        %v764 = vpop.f32.mrb[0].mxu0
        %765 = vmatprep.mubr.f32.mxu0 0.0
        %766 = vmatmul.mubr.f32.gmra.mrb[0].mxu0 %v694
        %v767 = vpop.f32.mrb[0].mxu0
        %v768 = vadd.f32 0.0, %v767
        %v769 = vpop.f32.mrb[0].mxu0
        %770 = vdwg.mxu0
        %v771 = vrcp.pop %v680
        %v772 = vmul.f32 1.0, %v771
        %v773 = vrcp.pop %v683
        %v774 = vmul.f32 1.0, %v773
        %v775 = vmul.f32 %v763, %v772
        %v776 = vmul.f32 %v768, %v774
        %779 = vrot.lane.b32.xlu0 %v775, 8
        %v780 = vpop.permute.xlu0 %779
        %781 = vrot.lane.b32.xlu0 %v776, 8
        %v782 = vpop.permute.xlu0 %781
        %vm785 = vcmask 130112
        %786 = vst.msk [vmem:[#allocation2] sm:$0xff] %vm785, %v780
        %787 = vst.msk [vmem:[#allocation2 + $0x8] sm:$0xff] %vm785, %v782
        %788 = vrot.lane.b32.xlu0 %v367, 112
        %v789 = vpop.permute.xlu0 %788
        %790 = vrot.lane.b32.xlu0 %v368, 112
        %v791 = vpop.permute.xlu0 %790
        %792 = vrot.lane.b32.xlu0 %v359, 80
        %v793 = vpop.permute.xlu0 %792
        %794 = vrot.lane.b32.xlu0 %v364, 80
        %v795 = vpop.permute.xlu0 %794
        %v796 = vsel %vm375, %v789, 0
        %v798 = vsel %vm375, %v791, 0
        %v800 = vsel %vm375, %v793, 0
        %v802 = vsel %vm375, %v795, 0
        %804 = vmatprep.subr.mxu0 0.0
        %805 = vmatpush1.xpose.msra.mxu0 %v800
        %806 = vmatprep.subr.mxu0 0.0
        %807 = vmatpush1.xpose.msra.mxu0 %v802
        %808 = vmatprep.subr.mxu0 0.0
        %809 = vmatpush1.xpose.msra.mxu0 0.0
        %810 = vmatprep.subr.mxu0 0.0
        %811 = vmatpush1.xpose.msra.mxu0 0.0
        %812 = vmatprep.subr.mxu0 0.0
        %813 = vmatpush1.xpose.msra.mxu0 0.0
        %814 = vmatprep.subr.mxu0 0.0
        %815 = vmatpush1.xpose.msra.mxu0 0.0
        %816 = vmatprep.subr.mxu0 0.0
        %817 = vmatpush1.xpose.msra.mxu0 0.0
        %818 = vmatprep.subr.mxu0 0.0
        %819 = vmatpush1.xpose.msra.mxu0 0.0
        %820 = vmatprep.subr.mxu0 0.0
        %821 = vmatpush1.xpose.msra.mxu0 0.0
        %822 = vmatprep.subr.mxu0 0.0
        %823 = vmatpush1.xpose.msra.mxu0 0.0
        %824 = vmatprep.subr.mxu0 0.0
        %825 = vmatpush1.xpose.msra.mxu0 0.0
        %826 = vmatprep.subr.mxu0 0.0
        %827 = vmatpush1.xpose.msra.mxu0 0.0
        %828 = vmatprep.subr.mxu0 0.0
        %829 = vmatpush1.xpose.msra.mxu0 0.0
        %830 = vmatprep.subr.mxu0 0.0
        %831 = vmatpush1.xpose.msra.mxu0 0.0
        %832 = vmatprep.subr.mxu0 0.0
        %833 = vmatpush1.xpose.msra.mxu0 0.0
        %834 = vmatprep.subr.mxu0 0.0
        %835 = vmatpush1.xpose.msra.mxu0 0.0
        %836 = vmatprep.subr.mxu0 0.0
        %837 = vmatpush1.xpose.msra.mxu0 0.0
        %838 = vmatprep.subr.mxu0 0.0
        %839 = vmatpush1.xpose.msra.mxu0 0.0
        %840 = vmatprep.subr.mxu0 0.0
        %841 = vmatpush1.xpose.msra.mxu0 0.0
        %842 = vmatprep.subr.mxu0 0.0
        %843 = vmatpush1.xpose.msra.mxu0 0.0
        %844 = vmatprep.subr.mxu0 0.0
        %845 = vmatpush1.xpose.msra.mxu0 0.0
        %846 = vmatprep.subr.mxu0 0.0
        %847 = vmatpush1.xpose.msra.mxu0 0.0
        %848 = vmatprep.subr.mxu0 0.0
        %849 = vmatpush1.xpose.msra.mxu0 0.0
        %850 = vmatprep.subr.mxu0 0.0
        %851 = vmatpush1.xpose.msra.mxu0 0.0
        %852 = vmatprep.subr.mxu0 0.0
        %853 = vmatpush1.xpose.msra.mxu0 0.0
        %854 = vmatprep.subr.mxu0 0.0
        %855 = vmatpush1.xpose.msra.mxu0 0.0
        %856 = vmatprep.subr.mxu0 0.0
        %857 = vmatpush1.xpose.msra.mxu0 0.0
        %858 = vmatprep.subr.mxu0 0.0
        %859 = vmatpush1.xpose.msra.mxu0 0.0
        %860 = vmatprep.subr.mxu0 0.0
        %861 = vmatpush1.xpose.msra.mxu0 0.0
        %862 = vmatprep.subr.mxu0 0.0
        %863 = vmatpush1.xpose.msra.mxu0 0.0
        %864 = vmatprep.subr.mxu0 0.0
        %865 = vmatpush1.xpose.msra.mxu0 0.0
        %866 = vmatprep.subr.mxu0 0.0
        %867 = vmatpush1.xpose.msra.mxu0 0.0
        %868 = vmatprep.mubr.f32.mxu0 0.0
        %869 = vmatmul.mubr.f32.gmra.mrb[0].mxu0 %v796
        %v870 = vpop.f32.mrb[0].mxu0
        %v871 = vadd.f32 0.0, %v870
        %v872 = vpop.f32.mrb[0].mxu0
        %873 = vmatprep.mubr.f32.mxu0 0.0
        %874 = vmatmul.mubr.f32.gmra.mrb[0].mxu0 %v798
        %v875 = vpop.f32.mrb[0].mxu0
        %v876 = vadd.f32 0.0, %v875
        %v877 = vpop.f32.mrb[0].mxu0
        %878 = vdwg.mxu0
        %v879 = vsel %vm461, %v871, -inf
        %880 = vmax.xlane.f32.xlu0 %v879
        %v881 = vpop.xlane.xlu0 %880
        %v882 = vsel %vm461, %v876, -inf
        %883 = vmax.xlane.f32.xlu0 %v882
        %v884 = vpop.xlane.xlu0 %883
        %v885 = vsub.f32 %v871, %v881
        %v886 = vsub.f32 %v876, %v884
        %v887 = vmul.f32 %v885, 1.442695
        %v888 = vpow.pop %v887
        %v889 = vmul.f32 %v886, 1.442695
        %v890 = vpow.pop %v889
        %v891 = vsel %vm461, %v888, 0.0
        %892 = vadd.xlane.f32.xlu0 %v891
        %v893 = vpop.xlane.xlu0 %892
        %v894 = vsel %vm461, %v890, 0.0
        %895 = vadd.xlane.f32.xlu0 %v894
        %v896 = vpop.xlane.xlu0 %895
        %897 = vrot.lane.b32.xlu0 %v359, 48
        %v898 = vpop.permute.xlu0 %897
        %899 = vrot.lane.b32.xlu0 %v364, 48
        %v900 = vpop.permute.xlu0 %899
        %v904 = vsel %vm461, %v888, 0
        %v907 = vsel %vm461, %v890, 0
        %909 = vmatprep.subr.mxu0 0.0
        %910 = vmatpush1.msra.mxu0 %v898
        %911 = vmatprep.subr.mxu0 0.0
        %912 = vmatpush1.msra.mxu0 %v900
        %913 = vmatprep.subr.mxu0 0.0
        %914 = vmatpush1.msra.mxu0 0.0
        %915 = vmatprep.subr.mxu0 0.0
        %916 = vmatpush1.msra.mxu0 0.0
        %917 = vmatprep.subr.mxu0 0.0
        %918 = vmatpush1.msra.mxu0 0.0
        %919 = vmatprep.subr.mxu0 0.0
        %920 = vmatpush1.msra.mxu0 0.0
        %921 = vmatprep.subr.mxu0 0.0
        %922 = vmatpush1.msra.mxu0 0.0
        %923 = vmatprep.subr.mxu0 0.0
        %924 = vmatpush1.msra.mxu0 0.0
        %925 = vmatprep.subr.mxu0 0.0
        %926 = vmatpush1.msra.mxu0 0.0
        %927 = vmatprep.subr.mxu0 0.0
        %928 = vmatpush1.msra.mxu0 0.0
        %929 = vmatprep.subr.mxu0 0.0
        %930 = vmatpush1.msra.mxu0 0.0
        %931 = vmatprep.subr.mxu0 0.0
        %932 = vmatpush1.msra.mxu0 0.0
        %933 = vmatprep.subr.mxu0 0.0
        %934 = vmatpush1.msra.mxu0 0.0
        %935 = vmatprep.subr.mxu0 0.0
        %936 = vmatpush1.msra.mxu0 0.0
        %937 = vmatprep.subr.mxu0 0.0
        %938 = vmatpush1.msra.mxu0 0.0
        %939 = vmatprep.subr.mxu0 0.0
        %940 = vmatpush1.msra.mxu0 0.0
        %941 = vmatprep.subr.mxu0 0.0
        %942 = vmatpush1.msra.mxu0 0.0
        %943 = vmatprep.subr.mxu0 0.0
        %944 = vmatpush1.msra.mxu0 0.0
        %945 = vmatprep.subr.mxu0 0.0
        %946 = vmatpush1.msra.mxu0 0.0
        %947 = vmatprep.subr.mxu0 0.0
        %948 = vmatpush1.msra.mxu0 0.0
        %949 = vmatprep.subr.mxu0 0.0
        %950 = vmatpush1.msra.mxu0 0.0
        %951 = vmatprep.subr.mxu0 0.0
        %952 = vmatpush1.msra.mxu0 0.0
        %953 = vmatprep.subr.mxu0 0.0
        %954 = vmatpush1.msra.mxu0 0.0
        %955 = vmatprep.subr.mxu0 0.0
        %956 = vmatpush1.msra.mxu0 0.0
        %957 = vmatprep.subr.mxu0 0.0
        %958 = vmatpush1.msra.mxu0 0.0
        %959 = vmatprep.subr.mxu0 0.0
        %960 = vmatpush1.msra.mxu0 0.0
        %961 = vmatprep.subr.mxu0 0.0
        %962 = vmatpush1.msra.mxu0 0.0
        %963 = vmatprep.subr.mxu0 0.0
        %964 = vmatpush1.msra.mxu0 0.0
        %965 = vmatprep.subr.mxu0 0.0
        %966 = vmatpush1.msra.mxu0 0.0
        %967 = vmatprep.subr.mxu0 0.0
        %968 = vmatpush1.msra.mxu0 0.0
        %969 = vmatprep.subr.mxu0 0.0
        %970 = vmatpush1.msra.mxu0 0.0
        %971 = vmatprep.subr.mxu0 0.0
        %972 = vmatpush1.msra.mxu0 0.0
        %973 = vmatprep.mubr.f32.mxu0 0.0
        %974 = vmatmul.mubr.f32.gmra.mrb[0].mxu0 %v904
        %v975 = vpop.f32.mrb[0].mxu0
        %v976 = vadd.f32 0.0, %v975
        %v977 = vpop.f32.mrb[0].mxu0
        %978 = vmatprep.mubr.f32.mxu0 0.0
        %979 = vmatmul.mubr.f32.gmra.mrb[0].mxu0 %v907
        %v980 = vpop.f32.mrb[0].mxu0
        %v981 = vadd.f32 0.0, %v980
        %v982 = vpop.f32.mrb[0].mxu0
        %983 = vdwg.mxu0
        %v984 = vrcp.pop %v893
        %v985 = vmul.f32 1.0, %v984
        %v986 = vrcp.pop %v896
        %v987 = vmul.f32 1.0, %v986
        %v988 = vmul.f32 %v976, %v985
        %v989 = vmul.f32 %v981, %v987
        %992 = vrot.lane.b32.xlu0 %v988, 16
        %v993 = vpop.permute.xlu0 %992
        %994 = vrot.lane.b32.xlu0 %v989, 16
        %v995 = vpop.permute.xlu0 %994
        %vm998 = vcmask 195712
        %999 = vst.msk [vmem:[#allocation2] sm:$0xff] %vm998, %v993
        %1000 = vst.msk [vmem:[#allocation2 + $0x8] sm:$0xff] %vm998, %v995
        %1001 = vrot.lane.b32.xlu0 %v367, 104
        %v1002 = vpop.permute.xlu0 %1001
        %1003 = vrot.lane.b32.xlu0 %v368, 104
        %v1004 = vpop.permute.xlu0 %1003
        %1005 = vrot.lane.b32.xlu0 %v359, 72
        %v1006 = vpop.permute.xlu0 %1005
        %1007 = vrot.lane.b32.xlu0 %v364, 72
        %v1008 = vpop.permute.xlu0 %1007
        %v1009 = vsel %vm375, %v1002, 0
        %v1011 = vsel %vm375, %v1004, 0
        %v1013 = vsel %vm375, %v1006, 0
        %v1015 = vsel %vm375, %v1008, 0
        %1017 = vmatprep.subr.mxu0 0.0
        %1018 = vmatpush1.xpose.msra.mxu0 %v1013
        %1019 = vmatprep.subr.mxu0 0.0
        %1020 = vmatpush1.xpose.msra.mxu0 %v1015
        %1021 = vmatprep.subr.mxu0 0.0
        %1022 = vmatpush1.xpose.msra.mxu0 0.0
        %1023 = vmatprep.subr.mxu0 0.0
        %1024 = vmatpush1.xpose.msra.mxu0 0.0
        %1025 = vmatprep.subr.mxu0 0.0
        %1026 = vmatpush1.xpose.msra.mxu0 0.0
        %1027 = vmatprep.subr.mxu0 0.0
        %1028 = vmatpush1.xpose.msra.mxu0 0.0
        %1029 = vmatprep.subr.mxu0 0.0
        %1030 = vmatpush1.xpose.msra.mxu0 0.0
        %1031 = vmatprep.subr.mxu0 0.0
        %1032 = vmatpush1.xpose.msra.mxu0 0.0
        %1033 = vmatprep.subr.mxu0 0.0
        %1034 = vmatpush1.xpose.msra.mxu0 0.0
        %1035 = vmatprep.subr.mxu0 0.0
        %1036 = vmatpush1.xpose.msra.mxu0 0.0
        %1037 = vmatprep.subr.mxu0 0.0
        %1038 = vmatpush1.xpose.msra.mxu0 0.0
        %1039 = vmatprep.subr.mxu0 0.0
        %1040 = vmatpush1.xpose.msra.mxu0 0.0
        %1041 = vmatprep.subr.mxu0 0.0
        %1042 = vmatpush1.xpose.msra.mxu0 0.0
        %1043 = vmatprep.subr.mxu0 0.0
        %1044 = vmatpush1.xpose.msra.mxu0 0.0
        %1045 = vmatprep.subr.mxu0 0.0
        %1046 = vmatpush1.xpose.msra.mxu0 0.0
        %1047 = vmatprep.subr.mxu0 0.0
        %1048 = vmatpush1.xpose.msra.mxu0 0.0
        %1049 = vmatprep.subr.mxu0 0.0
        %1050 = vmatpush1.xpose.msra.mxu0 0.0
        %1051 = vmatprep.subr.mxu0 0.0
        %1052 = vmatpush1.xpose.msra.mxu0 0.0
        %1053 = vmatprep.subr.mxu0 0.0
        %1054 = vmatpush1.xpose.msra.mxu0 0.0
        %1055 = vmatprep.subr.mxu0 0.0
        %1056 = vmatpush1.xpose.msra.mxu0 0.0
        %1057 = vmatprep.subr.mxu0 0.0
        %1058 = vmatpush1.xpose.msra.mxu0 0.0
        %1059 = vmatprep.subr.mxu0 0.0
        %1060 = vmatpush1.xpose.msra.mxu0 0.0
        %1061 = vmatprep.subr.mxu0 0.0
        %1062 = vmatpush1.xpose.msra.mxu0 0.0
        %1063 = vmatprep.subr.mxu0 0.0
        %1064 = vmatpush1.xpose.msra.mxu0 0.0
        %1065 = vmatprep.subr.mxu0 0.0
        %1066 = vmatpush1.xpose.msra.mxu0 0.0
        %1067 = vmatprep.subr.mxu0 0.0
        %1068 = vmatpush1.xpose.msra.mxu0 0.0
        %1069 = vmatprep.subr.mxu0 0.0
        %1070 = vmatpush1.xpose.msra.mxu0 0.0
        %1071 = vmatprep.subr.mxu0 0.0
        %1072 = vmatpush1.xpose.msra.mxu0 0.0
        %1073 = vmatprep.subr.mxu0 0.0
        %1074 = vmatpush1.xpose.msra.mxu0 0.0
        %1075 = vmatprep.subr.mxu0 0.0
        %1076 = vmatpush1.xpose.msra.mxu0 0.0
        %1077 = vmatprep.subr.mxu0 0.0
        %1078 = vmatpush1.xpose.msra.mxu0 0.0
        %1079 = vmatprep.subr.mxu0 0.0
        %1080 = vmatpush1.xpose.msra.mxu0 0.0
        %1081 = vmatprep.mubr.f32.mxu0 0.0
        %1082 = vmatmul.mubr.f32.gmra.mrb[0].mxu0 %v1009
        %v1083 = vpop.f32.mrb[0].mxu0
        %v1084 = vadd.f32 0.0, %v1083
        %v1085 = vpop.f32.mrb[0].mxu0
        %1086 = vmatprep.mubr.f32.mxu0 0.0
        %1087 = vmatmul.mubr.f32.gmra.mrb[0].mxu0 %v1011
        %v1088 = vpop.f32.mrb[0].mxu0
        %v1089 = vadd.f32 0.0, %v1088
        %v1090 = vpop.f32.mrb[0].mxu0
        %1091 = vdwg.mxu0
        %v1092 = vsel %vm461, %v1084, -inf
        %1093 = vmax.xlane.f32.xlu0 %v1092
        %v1094 = vpop.xlane.xlu0 %1093
        %v1095 = vsel %vm461, %v1089, -inf
        %1096 = vmax.xlane.f32.xlu0 %v1095
        %v1097 = vpop.xlane.xlu0 %1096
        %v1098 = vsub.f32 %v1084, %v1094
        %v1099 = vsub.f32 %v1089, %v1097
        %v1100 = vmul.f32 %v1098, 1.442695
        %v1101 = vpow.pop %v1100
        %v1102 = vmul.f32 %v1099, 1.442695
        %v1103 = vpow.pop %v1102
        %v1104 = vsel %vm461, %v1101, 0.0
        %1105 = vadd.xlane.f32.xlu0 %v1104
        %v1106 = vpop.xlane.xlu0 %1105
        %v1107 = vsel %vm461, %v1103, 0.0
        %1108 = vadd.xlane.f32.xlu0 %v1107
        %v1109 = vpop.xlane.xlu0 %1108
        %1110 = vrot.lane.b32.xlu0 %v359, 40
        %v1111 = vpop.permute.xlu0 %1110
        %1112 = vrot.lane.b32.xlu0 %v364, 40
        %v1113 = vpop.permute.xlu0 %1112
        %v1117 = vsel %vm461, %v1101, 0
        %v1120 = vsel %vm461, %v1103, 0
        %1122 = vmatprep.subr.mxu0 0.0
        %1123 = vmatpush1.msra.mxu0 %v1111
        %1124 = vmatprep.subr.mxu0 0.0
        %1125 = vmatpush1.msra.mxu0 %v1113
        %1126 = vmatprep.subr.mxu0 0.0
        %1127 = vmatpush1.msra.mxu0 0.0
        %1128 = vmatprep.subr.mxu0 0.0
        %1129 = vmatpush1.msra.mxu0 0.0
        %1130 = vmatprep.subr.mxu0 0.0
        %1131 = vmatpush1.msra.mxu0 0.0
        %1132 = vmatprep.subr.mxu0 0.0
        %1133 = vmatpush1.msra.mxu0 0.0
        %1134 = vmatprep.subr.mxu0 0.0
        %1135 = vmatpush1.msra.mxu0 0.0
        %1136 = vmatprep.subr.mxu0 0.0
        %1137 = vmatpush1.msra.mxu0 0.0
        %1138 = vmatprep.subr.mxu0 0.0
        %1139 = vmatpush1.msra.mxu0 0.0
        %1140 = vmatprep.subr.mxu0 0.0
        %1141 = vmatpush1.msra.mxu0 0.0
        %1142 = vmatprep.subr.mxu0 0.0
        %1143 = vmatpush1.msra.mxu0 0.0
        %1144 = vmatprep.subr.mxu0 0.0
        %1145 = vmatpush1.msra.mxu0 0.0
        %1146 = vmatprep.subr.mxu0 0.0
        %1147 = vmatpush1.msra.mxu0 0.0
        %1148 = vmatprep.subr.mxu0 0.0
        %1149 = vmatpush1.msra.mxu0 0.0
        %1150 = vmatprep.subr.mxu0 0.0
        %1151 = vmatpush1.msra.mxu0 0.0
        %1152 = vmatprep.subr.mxu0 0.0
        %1153 = vmatpush1.msra.mxu0 0.0
        %1154 = vmatprep.subr.mxu0 0.0
        %1155 = vmatpush1.msra.mxu0 0.0
        %1156 = vmatprep.subr.mxu0 0.0
        %1157 = vmatpush1.msra.mxu0 0.0
        %1158 = vmatprep.subr.mxu0 0.0
        %1159 = vmatpush1.msra.mxu0 0.0
        %1160 = vmatprep.subr.mxu0 0.0
        %1161 = vmatpush1.msra.mxu0 0.0
        %1162 = vmatprep.subr.mxu0 0.0
        %1163 = vmatpush1.msra.mxu0 0.0
        %1164 = vmatprep.subr.mxu0 0.0
        %1165 = vmatpush1.msra.mxu0 0.0
        %1166 = vmatprep.subr.mxu0 0.0
        %1167 = vmatpush1.msra.mxu0 0.0
        %1168 = vmatprep.subr.mxu0 0.0
        %1169 = vmatpush1.msra.mxu0 0.0
        %1170 = vmatprep.subr.mxu0 0.0
        %1171 = vmatpush1.msra.mxu0 0.0
        %1172 = vmatprep.subr.mxu0 0.0
        %1173 = vmatpush1.msra.mxu0 0.0
        %1174 = vmatprep.subr.mxu0 0.0
        %1175 = vmatpush1.msra.mxu0 0.0
        %1176 = vmatprep.subr.mxu0 0.0
        %1177 = vmatpush1.msra.mxu0 0.0
        %1178 = vmatprep.subr.mxu0 0.0
        %1179 = vmatpush1.msra.mxu0 0.0
        %1180 = vmatprep.subr.mxu0 0.0
        %1181 = vmatpush1.msra.mxu0 0.0
        %1182 = vmatprep.subr.mxu0 0.0
        %1183 = vmatpush1.msra.mxu0 0.0
        %1184 = vmatprep.subr.mxu0 0.0
        %1185 = vmatpush1.msra.mxu0 0.0
        %1186 = vmatprep.mubr.f32.mxu0 0.0
        %1187 = vmatmul.mubr.f32.gmra.mrb[0].mxu0 %v1117
        %v1188 = vpop.f32.mrb[0].mxu0
        %v1189 = vadd.f32 0.0, %v1188
        %v1190 = vpop.f32.mrb[0].mxu0
        %1191 = vmatprep.mubr.f32.mxu0 0.0
        %1192 = vmatmul.mubr.f32.gmra.mrb[0].mxu0 %v1120
        %v1193 = vpop.f32.mrb[0].mxu0
        %v1194 = vadd.f32 0.0, %v1193
        %v1195 = vpop.f32.mrb[0].mxu0
        %1196 = vdwg.mxu0
        %v1197 = vrcp.pop %v1106
        %v1198 = vmul.f32 1.0, %v1197
        %v1199 = vrcp.pop %v1109
        %v1200 = vmul.f32 1.0, %v1199
        %v1201 = vmul.f32 %v1189, %v1198
        %v1202 = vmul.f32 %v1194, %v1200
        %1205 = vrot.lane.b32.xlu0 %v1201, 24
        %v1206 = vpop.permute.xlu0 %1205
        %1207 = vrot.lane.b32.xlu0 %v1202, 24
        %v1208 = vpop.permute.xlu0 %1207
        %vm1211 = vcmask 261312
        %1212 = vst.msk [vmem:[#allocation2] sm:$0xff] %vm1211, %v1206
        %1213 = vst.msk [vmem:[#allocation2 + $0x8] sm:$0xff] %vm1211, %v1208
        %v1214 = vld [vmem:[#allocation2] sm:$0xff]
        %v1215 = vld [vmem:[#allocation2 + $0x8] sm:$0xff]
        %v1216 = vld [vmem:[#allocation8] sm:$0xff]
        %v1217 = vld [vmem:[#allocation8 + $0x8] sm:$0xff]
        %v1218 = vld [vmem:[#allocation8 + $0x10] sm:$0xff]
        %v1219 = vld [vmem:[#allocation8 + $0x18] sm:$0xff]
        %v1220 = vld [vmem:[%s4] sm:$0x1]
        %v1222 = vlaneseq
        %v1223 = vshrl.u32 %v1222, 7
        %v1224 = vsub.s32 0, %v1223
        %v1225 = vrot.slane %v1220, %v1224
        %v1228 = vsel %vm285, %v1214, 0
        %v1231 = vsel %vm285, %v1215, 0
        %1233 = vmatprep.subr.mxu0 0.0
        %1234 = vmatpush1.msra.mxu0 %v1216
        %1235 = vmatprep.subr.mxu0 0.0
        %1236 = vmatpush1.msra.mxu0 %v1217
        %1237 = vmatprep.subr.mxu0 0.0
        %1238 = vmatpush1.msra.mxu0 %v1218
        %1239 = vmatprep.subr.mxu0 0.0
        %1240 = vmatpush1.msra.mxu0 %v1219
        %1241 = vmatprep.subr.mxu0 0.0
        %1242 = vmatpush1.msra.mxu0 0.0
        %1243 = vmatprep.subr.mxu0 0.0
        %1244 = vmatpush1.msra.mxu0 0.0
        %1245 = vmatprep.subr.mxu0 0.0
        %1246 = vmatpush1.msra.mxu0 0.0
        %1247 = vmatprep.subr.mxu0 0.0
        %1248 = vmatpush1.msra.mxu0 0.0
        %1249 = vmatprep.subr.mxu0 0.0
        %1250 = vmatpush1.msra.mxu0 0.0
        %1251 = vmatprep.subr.mxu0 0.0
        %1252 = vmatpush1.msra.mxu0 0.0
        %1253 = vmatprep.subr.mxu0 0.0
        %1254 = vmatpush1.msra.mxu0 0.0
        %1255 = vmatprep.subr.mxu0 0.0
        %1256 = vmatpush1.msra.mxu0 0.0
        %1257 = vmatprep.subr.mxu0 0.0
        %1258 = vmatpush1.msra.mxu0 0.0
        %1259 = vmatprep.subr.mxu0 0.0
        %1260 = vmatpush1.msra.mxu0 0.0
        %1261 = vmatprep.subr.mxu0 0.0
        %1262 = vmatpush1.msra.mxu0 0.0
        %1263 = vmatprep.subr.mxu0 0.0
        %1264 = vmatpush1.msra.mxu0 0.0
        %1265 = vmatprep.subr.mxu0 0.0
        %1266 = vmatpush1.msra.mxu0 0.0
        %1267 = vmatprep.subr.mxu0 0.0
        %1268 = vmatpush1.msra.mxu0 0.0
        %1269 = vmatprep.subr.mxu0 0.0
        %1270 = vmatpush1.msra.mxu0 0.0
        %1271 = vmatprep.subr.mxu0 0.0
        %1272 = vmatpush1.msra.mxu0 0.0
        %1273 = vmatprep.subr.mxu0 0.0
        %1274 = vmatpush1.msra.mxu0 0.0
        %1275 = vmatprep.subr.mxu0 0.0
        %1276 = vmatpush1.msra.mxu0 0.0
        %1277 = vmatprep.subr.mxu0 0.0
        %1278 = vmatpush1.msra.mxu0 0.0
        %1279 = vmatprep.subr.mxu0 0.0
        %1280 = vmatpush1.msra.mxu0 0.0
        %1281 = vmatprep.subr.mxu0 0.0
        %1282 = vmatpush1.msra.mxu0 0.0
        %1283 = vmatprep.subr.mxu0 0.0
        %1284 = vmatpush1.msra.mxu0 0.0
        %1285 = vmatprep.subr.mxu0 0.0
        %1286 = vmatpush1.msra.mxu0 0.0
        %1287 = vmatprep.subr.mxu0 0.0
        %1288 = vmatpush1.msra.mxu0 0.0
        %1289 = vmatprep.subr.mxu0 0.0
        %1290 = vmatpush1.msra.mxu0 0.0
        %1291 = vmatprep.subr.mxu0 0.0
        %1292 = vmatpush1.msra.mxu0 0.0
        %1293 = vmatprep.subr.mxu0 0.0
        %1294 = vmatpush1.msra.mxu0 0.0
        %1295 = vmatprep.subr.mxu0 0.0
        %1296 = vmatpush1.msra.mxu0 0.0
        %1297 = vmatprep.mubr.f32.mxu0 0.0
        %1298 = vmatmul.mubr.f32.gmra.mrb[0].mxu0 %v1228
        %v1299 = vpop.f32.mrb[0].mxu0
        %v1300 = vadd.f32 %v1225, %v1299
        %v1301 = vpop.f32.mrb[0].mxu0
        %1302 = vmatprep.mubr.f32.mxu0 0.0
        %1303 = vmatmul.mubr.f32.gmra.mrb[0].mxu0 %v1231
        %v1304 = vpop.f32.mrb[0].mxu0
        %v1305 = vadd.f32 %v1225, %v1304
        %v1306 = vpop.f32.mrb[0].mxu0
        %1307 = vdwg.mxu0
        %1308 = vst.msk [vmem:[%s271] sm:$0xff] %vm285, %v1300
        %1309 = vst.msk [vmem:[%s271 + $0x8] sm:$0xff] %vm285, %v1305
        %s1310 = sand.u32 %s141, 1
        %s1311 = scalar_lea.sflag [#allocation5], %s1310
        %s1312 = sand.u32 %s141, 1
        %s1313 = smul.addr %s1312, 16
        %s1314 = scalar_lea.vmem [#allocation9], %s1313
        // Predicated region
        $region53: #{tpu_custom_call.1} parent=39 // pred_check
          %p1315 = pneg %p151
        $region54: #{tpu_custom_call.1} parent=39 // pred_check_branch
          %1317 = sbr.rel (%p1315) target = $region56
        $region55: #{tpu_custom_call.1} parent=39 // pred_region
          %s1319 = ssub.s32 256, 256
          %1320 = vsyncadd %s1311, %s1319
          %s1321 = smul.addr %s23, 2
          %s1322 = smul.addr %s1321, 128
          %s1323 = scalar_lea.hbm %s5, %s1322
          %s1324 = sshll.u32 %s1314, 4
          %s1325 = int_to_ptr.vmem [resolvable:$true] %s1324
          %1330 = dma.vmem_to_hbm [thread:$0]  %s1325, 256, %s1323, %s1311, 128, 128, 8
        $region56: #{tpu_custom_call.1} parent=39 // pred_fallthru
          _
      $region40: #{tpu_custom_call.1} parent=5 // pred_fallthru
        _
      %p1331 = scmp.le.s32.totalorder 2, %s18
      // Predicated region
      $region57: #{tpu_custom_call.1} parent=5 // pred_check
        %p1332 = pneg %p1331
      $region58: #{tpu_custom_call.1} parent=5 // pred_check_branch
        %1334 = sbr.rel (%p1332) target = $region60
      $region59: #{tpu_custom_call.1} parent=5 // pred_region
        %s1335 = ssub.s32 %s18, 2
        // Predicated region
        $region61: #{tpu_custom_call.1} parent=59 // pred_check
          %p1336 = pneg %p157
        $region62: #{tpu_custom_call.1} parent=59 // pred_check_branch
          %1338 = sbr.rel (%p1336) target = $region64
        $region63: #{tpu_custom_call.1} parent=59 // pred_region
          %s1339 = sand.u32 %s142, 1
          %s1340 = scalar_lea.sflag [#allocation5], %s1339
          %s1341 = sand.u32 %s142, 1
          %s1342 = smul.addr %s1341, 16
          %s1343 = scalar_lea.vmem [#allocation9], %s1342
          %1344 = dma.done %s1340, 256
        $region64: #{tpu_custom_call.1} parent=59 // pred_fallthru
          _
      $region60: #{tpu_custom_call.1} parent=5 // pred_fallthru
        _
    $region6: #{tpu_custom_call.1} parent=1 // loop_footer
      %s22 = sadd.s32 1, %s18
    $region7: #{tpu_custom_call.1} parent=1 // loop_footer_branch
      %17 = sbr.rel target = $region3
    $region8: #{tpu_custom_call.1} parent=1 // loop_exit
      _
    %1345 = vsyncpa [#allocation4], 1
    %s1346 = scalar_lea.sflag [#allocation4], 1
    %1347 = vsyncpa %s1346, 1
    %1348 = vsyncpa [#allocation7], 1
    %1349 = vsyncpa [#allocation5], 1
    %s1350 = scalar_lea.sflag [#allocation5], 1
    %1351 = vsyncpa %s1350, 1

</llo_original>
